<compile_context>
chip_gen: v6e
topology: v6e:2x2x1
jax: 0.10.0
libtpu: 0.0.40
codegen_flags: <defaults>
</compile_context>

<pallas_src>
import functools

import jax
import jax.numpy as jnp
from jax.experimental import pallas as pl
from jax.experimental.pallas import tpu as pltpu

BN_EPS = 1e-5
_LANE = 128
_SUBLANE_BF16 = 16                         # bf16 sublane pack
_TILE_M_PASS2_TARGET = 16384               # lane-width target for BN+ReLU pass
_VMEM_LIMIT_BYTES = 32 * 1024 * 1024       # safe on v5e / v6e / v7x


def _round_up(x, m):
    return (x + m - 1) // m * m


@functools.lru_cache(maxsize=None)
def _tile_m_target():
    # Generation gate: v7x has 64 MiB VMEM per TensorCore -> keep the matmul
    # tile at 4096 lanes; v5e/v6e (128 MiB) can take 8192.  Either choice is
    # safe on every part under the 32 MiB scoped limit below.
    try:
        vmem = pltpu.get_tpu_info().vmem_capacity_bytes
    except Exception:
        vmem = 64 * 1024 * 1024            # universally safe fallback
    return 8192 if vmem > 64 * 1024 * 1024 else 4096


# ----------------------------- Pallas kernels ------------------------------ #
def _matmul_stats_kernel(w_ref, a_ref, y_ref, s_ref, ss_ref):
    # w: (Cout, Kp) bf16 resident, a: (Kp, TILE_M) bf16 tile.
    y = jnp.dot(w_ref[...], a_ref[...], preferred_element_type=jnp.float32)
    y_ref[...] = y.astype(y_ref.dtype)                     # bf16 store
    # One-pass per-channel partial statistics from the f32 accumulator
    # (lane-axis XLU reductions).
    s_ref[0] = jnp.sum(y, axis=1, keepdims=True)           # (Cout, 1)
    ss_ref[0] = jnp.sum(y * y, axis=1, keepdims=True)      # (Cout, 1)


def _bn_relu_kernel(scale_ref, shift_ref, y_ref, o_ref):
    # scale/shift: (Cout, 1) f32 resident; y: (Cout, TILE) bf16 tile.
    y = y_ref[...].astype(jnp.float32)
    o_ref[...] = jnp.maximum(y * scale_ref[...] + shift_ref[...],
                             0.0).astype(o_ref.dtype)


def _matmul_bias_kernel(w_ref, b_ref, a_ref, o_ref):
    y = jnp.dot(w_ref[...], a_ref[...], preferred_element_type=jnp.float32)
    o_ref[...] = y + b_ref[...]


def _compiler_params():
    return pltpu.CompilerParams(
        dimension_semantics=("parallel",),   # independent M tiles (v7x: 2 TCs)
        vmem_limit_bytes=_VMEM_LIMIT_BYTES,
    )


# ------------------------------ host-side prep ----------------------------- #
def _im2col_T(x_cnhw, ksize, stride, pad):
    """Patch matrix in transposed bf16 form A^T: (KH*KW*Cin, N*Ho*Wo)."""
    c, n, h, w = x_cnhw.shape
    xp = jnp.pad(x_cnhw.astype(jnp.bfloat16),
                 ((0, 0), (0, 0), (pad, pad), (pad, pad)))
    ho = (h + 2 * pad - ksize) // stride + 1
    wo = (w + 2 * pad - ksize) // stride + 1
    m = n * ho * wo
    rows = []
    for kh in range(ksize):
        for kw in range(ksize):
            rows.append(
                xp[:, :, kh:kh + stride * ho:stride, kw:kw + stride * wo:stride]
                .reshape(c, m))
    a_t = jnp.concatenate(rows, axis=0)      # (K, M), row = (kh*KW + kw)*C + c
    return a_t, (n, ho, wo)


def _prep(x_cnhw, w_oihw, stride, pad):
    """im2col + minimal zero-padding + bf16 weight flattening for one layer."""
    cout, cin, ksize, _ = w_oihw.shape
    a_t, (n, ho, wo) = _im2col_T(x_cnhw, ksize, stride, pad)
    k, m = a_t.shape
    # K is the sublane dim of the A^T block and spans the full array, so it
    # only needs the bf16 sublane pack (16), not a multiple of 128.
    k_pad = _round_up(k, _SUBLANE_BF16)
    tgt = _tile_m_target()
    tile_m = tgt if m >= tgt else _round_up(m, _LANE)
    m_pad = _round_up(m, tile_m)
    a_t = jnp.pad(a_t, ((0, k_pad - k), (0, m_pad - m)))   # zero pad: exact
    w_flat = jnp.transpose(w_oihw, (0, 2, 3, 1)).reshape(cout, k)
    w_flat = jnp.pad(w_flat, ((0, 0), (0, k_pad - k))).astype(jnp.bfloat16)
    meta = dict(n=n, ho=ho, wo=wo, m=m, cout=cout,
                k_pad=k_pad, m_pad=m_pad, tile_m=tile_m, nt=m_pad // tile_m)
    return a_t, w_flat, meta


def _pass2_tile(m_pad, tile_m):
    """Widest multiple of the matmul tile dividing m_pad, <= pass-2 target."""
    nt1 = m_pad // tile_m
    best = 1
    for f in range(nt1, 0, -1):
        if nt1 % f == 0 and f * tile_m <= _TILE_M_PASS2_TARGET:
            best = f
            break
    return best * tile_m


# ------------------------------ layer wrappers ------------------------------ #
def conv_bn_relu(x_cnhw, w_oihw, gamma, beta, stride, pad):
    a_t, w_flat, md = _prep(x_cnhw, w_oihw, stride, pad)
    cout, k_pad = md["cout"], md["k_pad"]
    tile_m, m_pad, nt = md["tile_m"], md["m_pad"], md["nt"]

    # ---- pass 1: tiled matmul (bf16 out) + per-tile BN partial statistics ----
    bytes1 = (k_pad * m_pad * 2 + cout * k_pad * 2
              + cout * m_pad * 2 + 2 * nt * cout * 4)
    y_t, s_part, ss_part = pl.pallas_call(
        _matmul_stats_kernel,
        grid=(nt,),
        in_specs=[
            pl.BlockSpec((cout, k_pad), lambda i: (0, 0)),      # W^T resident
            pl.BlockSpec((k_pad, tile_m), lambda i: (0, i)),    # A^T tile
        ],
        out_specs=[
            pl.BlockSpec((cout, tile_m), lambda i: (0, i)),     # y^T tile (bf16)
            pl.BlockSpec((1, cout, 1), lambda i: (i, 0, 0)),    # partial sum
            pl.BlockSpec((1, cout, 1), lambda i: (i, 0, 0)),    # partial sumsq
        ],
        out_shape=[
            jax.ShapeDtypeStruct((cout, m_pad), jnp.bfloat16),
            jax.ShapeDtypeStruct((nt, cout, 1), jnp.float32),
            jax.ShapeDtypeStruct((nt, cout, 1), jnp.float32),
        ],
        compiler_params=_compiler_params(),
        cost_estimate=pl.CostEstimate(flops=2 * m_pad * k_pad * cout,
                                      transcendentals=0, bytes_accessed=bytes1),
    )(w_flat, a_t)

    # ---- global BN statistics (tiny cross-tile reduction, plain XLA) ----
    # NOTE: E[y^2] - E[y]^2 in f32 can lose precision at very large M with
    # strongly offset channel means; a shifted two-moment scheme would fix it
    # (not an issue at these scales / unit-variance activations).
    inv_m = 1.0 / float(md["m"])                 # divide by the REAL row count
    mean = jnp.sum(s_part[:, :, 0], axis=0) * inv_m
    var = jnp.maximum(jnp.sum(ss_part[:, :, 0], axis=0) * inv_m - mean * mean, 0.0)
    scale = gamma * jax.lax.rsqrt(var + BN_EPS)  # biased var == PyTorch train mode
    shift = beta - mean * scale

    # ---- pass 2: tiled normalize + ReLU (wide lane tiles, bf16 in/out) ----
    tile_m2 = _pass2_tile(m_pad, tile_m)
    nt2 = m_pad // tile_m2
    bytes2 = 2 * cout * m_pad * 2 + 2 * cout * 4
    z_t = pl.pallas_call(
        _bn_relu_kernel,
        grid=(nt2,),
        in_specs=[
            pl.BlockSpec((cout, 1), lambda i: (0, 0)),          # scale resident
            pl.BlockSpec((cout, 1), lambda i: (0, 0)),          # shift resident
            pl.BlockSpec((cout, tile_m2), lambda i: (0, i)),
        ],
        out_specs=pl.BlockSpec((cout, tile_m2), lambda i: (0, i)),
        out_shape=jax.ShapeDtypeStruct((cout, m_pad), jnp.bfloat16),
        compiler_params=_compiler_params(),
        cost_estimate=pl.CostEstimate(flops=3 * m_pad * cout,
                                      transcendentals=0, bytes_accessed=bytes2),
    )(scale.reshape(cout, 1), shift.reshape(cout, 1), y_t)

    return z_t[:, :md["m"]].reshape(cout, md["n"], md["ho"], md["wo"])


def conv_bias(x_cnhw, w_oihw, bias, stride, pad):
    a_t, w_flat, md = _prep(x_cnhw, w_oihw, stride, pad)
    cout, k_pad = md["cout"], md["k_pad"]
    tile_m, m_pad, nt = md["tile_m"], md["m_pad"], md["nt"]

    bytes1 = k_pad * m_pad * 2 + cout * k_pad * 2 + cout * m_pad * 4 + cout * 4
    z_t = pl.pallas_call(
        _matmul_bias_kernel,
        grid=(nt,),
        in_specs=[
            pl.BlockSpec((cout, k_pad), lambda i: (0, 0)),      # W^T resident
            pl.BlockSpec((cout, 1), lambda i: (0, 0)),          # bias resident
            pl.BlockSpec((k_pad, tile_m), lambda i: (0, i)),    # A^T tile
        ],
        out_specs=pl.BlockSpec((cout, tile_m), lambda i: (0, i)),
        out_shape=jax.ShapeDtypeStruct((cout, m_pad), jnp.float32),
        compiler_params=_compiler_params(),
        cost_estimate=pl.CostEstimate(flops=2 * m_pad * k_pad * cout,
                                      transcendentals=0, bytes_accessed=bytes1),
    )(w_flat, bias.reshape(cout, 1).astype(jnp.float32), a_t)

    return z_t[:, :md["m"]].reshape(cout, md["n"], md["ho"], md["wo"])


# ----------------------------- FeatureNet ---------------------------------- #
_CBR_CFG = [
    # name,   Cin, Cout, k, stride, pad
    ("conv0", 3, 8, 3, 1, 1),
    ("conv1", 8, 8, 3, 1, 1),
    ("conv2", 8, 16, 5, 2, 2),
    ("conv3", 16, 16, 3, 1, 1),
    ("conv4", 16, 16, 3, 1, 1),
    ("conv5", 16, 32, 5, 2, 2),
    ("conv6", 32, 32, 3, 1, 1),
]


def init_params(key):
    params = {}
    keys = jax.random.split(key, len(_CBR_CFG) + 2)
    for k_, (name, cin, cout, ks, s, p) in zip(keys[: len(_CBR_CFG)], _CBR_CFG):
        fan_in = cin * ks * ks
        params[name] = dict(
            w=jax.random.normal(k_, (cout, cin, ks, ks), jnp.float32)
            / jnp.sqrt(float(fan_in)),
            gamma=jnp.ones((cout,), jnp.float32),   # BatchNorm2d default weight
            beta=jnp.zeros((cout,), jnp.float32),   # BatchNorm2d default bias
            stride=s,
            pad=p,
        )
    params["feature"] = dict(
        w=jax.random.normal(keys[-2], (32, 32, 3, 3), jnp.float32)
        / jnp.sqrt(32.0 * 9.0),
        b=0.01 * jax.random.normal(keys[-1], (32,), jnp.float32),
        stride=1,
        pad=1,
    )
    return params


def featurenet_forward(x_nchw, params):
    # Carry activations channels-first (C, N, H, W): keeps the transposed
    # (K, M) patch matrix and the (Cout, M) kernel outputs transpose-free.
    x = jnp.transpose(x_nchw, (1, 0, 2, 3))
    # x = conv1(conv0(x)); x = conv4(conv3(conv2(x))); x = feature(conv6(conv5(x)))
    for name in ["conv0", "conv1", "conv2", "conv3", "conv4", "conv5", "conv6"]:
        p = params[name]
        x = conv_bn_relu(x, p["w"], p["gamma"], p["beta"], p["stride"], p["pad"])
    p = params["feature"]
    x = conv_bias(x, p["w"], p["b"], p["stride"], p["pad"])
    return jnp.transpose(x, (1, 0, 2, 3))   # -> NCHW


# ------------------------- pure-JAX reference ------------------------------ #
def _ref_forward(x_nchw, params):
    def conv(x, w, s, p):
        return jax.lax.conv_general_dilated(
            x, w, (s, s), ((p, p), (p, p)),
            dimension_numbers=("NCHW", "OIHW", "NCHW"),
            precision=jax.lax.Precision.HIGHEST,
        )

    def cbr(x, pr):
        y = conv(x, pr["w"], pr["stride"], pr["pad"])
        mean = y.mean(axis=(0, 2, 3), keepdims=True)
        var = ((y - mean) ** 2).mean(axis=(0, 2, 3), keepdims=True)
        y = (y - mean) / jnp.sqrt(var + BN_EPS)
        y = y * pr["gamma"].reshape(1, -1, 1, 1) + pr["beta"].reshape(1, -1, 1, 1)
        return jnp.maximum(y, 0.0)

    x = x_nchw
    for name in ["conv0", "conv1", "conv2", "conv3", "conv4", "conv5", "conv6"]:
        x = cbr(x, params[name])
    pr = params["feature"]
    return conv(x, pr["w"], 1, 1) + pr["b"].reshape(1, -1, 1, 1)


# --------------------------------- main ------------------------------------ #
if __name__ == "__main__":
    key = jax.random.PRNGKey(0)
    k_x, k_p = jax.random.split(key)
    x = jax.random.normal(k_x, (2, 3, 16, 16), jnp.float32)  # NCHW input
    params = init_params(k_p)

    fwd = jax.jit(functools.partial(featurenet_forward, params=params))
    out = fwd(x)
    out = jax.block_until_ready(out)

    assert out.shape == (2, 32, 4, 4), out.shape  # two stride-2 convs: 16 -> 8 -> 4

    ref = jax.block_until_ready(_ref_forward(x, params))
    assert jnp.allclose(out, ref, rtol=5e-2, atol=5e-2), float(
        jnp.max(jnp.abs(out - ref))
    )

    print("KERNEL_OK")
</pallas_src>

<mosaic_0001>
module attributes {stable_mosaic.version = 11 : i64} {
  func.func @_matmul_stats_kernel(%arg0: i32, %arg1: memref<8x32xbf16, #tpu.memory_space<vmem>>, %arg2: memref<32x512xbf16, #tpu.memory_space<vmem>>, %arg3: memref<8x512xbf16, #tpu.memory_space<vmem>>, %arg4: memref<1x8x1xf32, #tpu.memory_space<vmem>>, %arg5: memref<1x8x1xf32, #tpu.memory_space<vmem>>) attributes {dimension_semantics = [#tpu.dimension_semantics<parallel>], iteration_bounds = array<i64: 1>, scalar_prefetch = 0 : i64, scratch_operands = 0 : i64, tpu.core_type = #tpu.core_type<tc>, window_params = [{pipeline_mode = #tpu.pipeline_mode<synchronous>, transform_indices = @transform_0, window_bounds = array<i64: 8, 32>}, {transform_indices = @transform_1, window_bounds = array<i64: 32, 512>}, {transform_indices = @transform_2, window_bounds = array<i64: 8, 512>}, {transform_indices = @transform_3, window_bounds = array<i64: 1, 8, 1>}, {transform_indices = @transform_4, window_bounds = array<i64: 1, 8, 1>}]} {
    %c0 = arith.constant 0 : index
    %c0_0 = arith.constant 0 : index
    %0 = vector.load %arg1[%c0, %c0_0] : memref<8x32xbf16, #tpu.memory_space<vmem>>, vector<8x32xbf16>
    %c0_1 = arith.constant 0 : index
    %c0_2 = arith.constant 0 : index
    %1 = vector.load %arg2[%c0_1, %c0_2] : memref<32x512xbf16, #tpu.memory_space<vmem>>, vector<32x512xbf16>
    %cst = arith.constant dense<0.000000e+00> : vector<8x512xf32>
    %2 = tpu.matmul %0, %1, %cst {dimension_numbers = #tpu.dot_dimension_numbers<[1], [0], [0], [1], [0, 0, 1, 1], [], []>} : vector<8x32xbf16>, vector<32x512xbf16>, vector<8x512xf32> -> vector<8x512xf32>
    %3 = arith.truncf %2 : vector<8x512xf32> to vector<8x512xbf16>
    %c0_3 = arith.constant 0 : index
    %c0_4 = arith.constant 0 : index
    %4 = vector.load %arg3[%c0_3, %c0_4] : memref<8x512xbf16, #tpu.memory_space<vmem>>, vector<8x512xbf16>
    tpu.vector_store %arg3[%c0_3, %c0_4], %3 {strides = array<i32>} : memref<8x512xbf16, #tpu.memory_space<vmem>>, vector<8x512xbf16>,
    %cst_5 = arith.constant dense<0.000000e+00> : vector<8xf32>
    %5 = vector.multi_reduction <add>, %2, %cst_5 [1] : vector<8x512xf32> to vector<8xf32>
    %6 = vector.shape_cast %5 : vector<8xf32> to vector<8x1xf32>
    %c0_6 = arith.constant 0 : index
    %c0_7 = arith.constant 0 : index
    %c0_8 = arith.constant 0 : index
    %7 = vector.load %arg4[%c0_6, %c0_7, %c0_8] : memref<1x8x1xf32, #tpu.memory_space<vmem>>, vector<1x8x1xf32>
    %8 = vector.shape_cast %7 : vector<1x8x1xf32> to vector<8x1xf32>
    %9 = vector.shape_cast %6 : vector<8x1xf32> to vector<1x8x1xf32>
    tpu.vector_store %arg4[%c0_6, %c0_7, %c0_8], %9 {strides = array<i32>} : memref<1x8x1xf32, #tpu.memory_space<vmem>>, vector<1x8x1xf32>,
    %10 = arith.mulf %2, %2 : vector<8x512xf32>
    %cst_9 = arith.constant dense<0.000000e+00> : vector<8xf32>
    %11 = vector.multi_reduction <add>, %10, %cst_9 [1] : vector<8x512xf32> to vector<8xf32>
    %12 = vector.shape_cast %11 : vector<8xf32> to vector<8x1xf32>
    %c0_10 = arith.constant 0 : index
    %c0_11 = arith.constant 0 : index
    %c0_12 = arith.constant 0 : index
    %13 = vector.load %arg5[%c0_10, %c0_11, %c0_12] : memref<1x8x1xf32, #tpu.memory_space<vmem>>, vector<1x8x1xf32>
    %14 = vector.shape_cast %13 : vector<1x8x1xf32> to vector<8x1xf32>
    %15 = vector.shape_cast %12 : vector<8x1xf32> to vector<1x8x1xf32>
    tpu.vector_store %arg5[%c0_10, %c0_11, %c0_12], %15 {strides = array<i32>} : memref<1x8x1xf32, #tpu.memory_space<vmem>>, vector<1x8x1xf32>,
    return
  }
  func.func @transform_0(%arg0: i32) -> (i32, i32) {
    %c0_i32 = arith.constant 0 : i32
    %c0_i32_0 = arith.constant 0 : i32
    %c0_i32_1 = arith.constant 0 : i32
    return %c0_i32, %c0_i32_0 : i32, i32
  }
  func.func @transform_1(%arg0: i32) -> (i32, i32) {
    %c0_i32 = arith.constant 0 : i32
    %c0_i32_0 = arith.constant 0 : i32
    return %c0_i32, %arg0 : i32, i32
  }
  func.func @transform_2(%arg0: i32) -> (i32, i32) {
    %c0_i32 = arith.constant 0 : i32
    %c0_i32_0 = arith.constant 0 : i32
    return %c0_i32, %arg0 : i32, i32
  }
  func.func @transform_3(%arg0: i32) -> (i32, i32, i32) {
    %c0_i32 = arith.constant 0 : i32
    %c0_i32_0 = arith.constant 0 : i32
    %c0_i32_1 = arith.constant 0 : i32
    return %arg0, %c0_i32, %c0_i32_0 : i32, i32, i32
  }
  func.func @transform_4(%arg0: i32) -> (i32, i32, i32) {
    %c0_i32 = arith.constant 0 : i32
    %c0_i32_0 = arith.constant 0 : i32
    %c0_i32_1 = arith.constant 0 : i32
    return %arg0, %c0_i32, %c0_i32_0 : i32, i32, i32
  }
}

module attributes {stable_mosaic.version = 11 : i64} {
  func.func @_bn_relu_kernel(%arg0: i32, %arg1: memref<8x1xf32, #tpu.memory_space<vmem>>, %arg2: memref<8x1xf32, #tpu.memory_space<vmem>>, %arg3: memref<8x512xbf16, #tpu.memory_space<vmem>>, %arg4: memref<8x512xbf16, #tpu.memory_space<vmem>>) attributes {dimension_semantics = [#tpu.dimension_semantics<parallel>], iteration_bounds = array<i64: 1>, scalar_prefetch = 0 : i64, scratch_operands = 0 : i64, tpu.core_type = #tpu.core_type<tc>, window_params = [{pipeline_mode = #tpu.pipeline_mode<synchronous>, transform_indices = @transform_0, window_bounds = array<i64: 8, 1>}, {pipeline_mode = #tpu.pipeline_mode<synchronous>, transform_indices = @transform_1, window_bounds = array<i64: 8, 1>}, {transform_indices = @transform_2, window_bounds = array<i64: 8, 512>}, {transform_indices = @transform_3, window_bounds = array<i64: 8, 512>}]} {
    %c0 = arith.constant 0 : index
    %c0_0 = arith.constant 0 : index
    %0 = vector.load %arg3[%c0, %c0_0] : memref<8x512xbf16, #tpu.memory_space<vmem>>, vector<8x512xbf16>
    %1 = arith.extf %0 : vector<8x512xbf16> to vector<8x512xf32>
    %c0_1 = arith.constant 0 : index
    %c0_2 = arith.constant 0 : index
    %2 = vector.load %arg1[%c0_1, %c0_2] : memref<8x1xf32, #tpu.memory_space<vmem>>, vector<8x1xf32>
    %3 = vector.broadcast %2 : vector<8x1xf32> to vector<8x512xf32>
    %4 = arith.mulf %1, %3 : vector<8x512xf32>
    %c0_3 = arith.constant 0 : index
    %c0_4 = arith.constant 0 : index
    %5 = vector.load %arg2[%c0_3, %c0_4] : memref<8x1xf32, #tpu.memory_space<vmem>>, vector<8x1xf32>
    %6 = vector.broadcast %5 : vector<8x1xf32> to vector<8x512xf32>
    %7 = arith.addf %4, %6 : vector<8x512xf32>
    %cst = arith.constant 0.000000e+00 : f32
    %8 = vector.broadcast %cst : f32 to vector<8x512xf32>
    %9 = arith.maximumf %7, %8 : vector<8x512xf32>
    %10 = arith.truncf %9 : vector<8x512xf32> to vector<8x512xbf16>
    %c0_5 = arith.constant 0 : index
    %c0_6 = arith.constant 0 : index
    %11 = vector.load %arg4[%c0_5, %c0_6] : memref<8x512xbf16, #tpu.memory_space<vmem>>, vector<8x512xbf16>
    tpu.vector_store %arg4[%c0_5, %c0_6], %10 {strides = array<i32>} : memref<8x512xbf16, #tpu.memory_space<vmem>>, vector<8x512xbf16>,
    return
  }
  func.func @transform_0(%arg0: i32) -> (i32, i32) {
    %c0_i32 = arith.constant 0 : i32
    %c0_i32_0 = arith.constant 0 : i32
    %c0_i32_1 = arith.constant 0 : i32
    return %c0_i32, %c0_i32_0 : i32, i32
  }
  func.func @transform_1(%arg0: i32) -> (i32, i32) {
    %c0_i32 = arith.constant 0 : i32
    %c0_i32_0 = arith.constant 0 : i32
    %c0_i32_1 = arith.constant 0 : i32
    return %c0_i32, %c0_i32_0 : i32, i32
  }
  func.func @transform_2(%arg0: i32) -> (i32, i32) {
    %c0_i32 = arith.constant 0 : i32
    %c0_i32_0 = arith.constant 0 : i32
    return %c0_i32, %arg0 : i32, i32
  }
  func.func @transform_3(%arg0: i32) -> (i32, i32) {
    %c0_i32 = arith.constant 0 : i32
    %c0_i32_0 = arith.constant 0 : i32
    return %c0_i32, %arg0 : i32, i32
  }
}

module attributes {stable_mosaic.version = 11 : i64} {
  func.func @_matmul_stats_kernel(%arg0: i32, %arg1: memref<8x80xbf16, #tpu.memory_space<vmem>>, %arg2: memref<80x512xbf16, #tpu.memory_space<vmem>>, %arg3: memref<8x512xbf16, #tpu.memory_space<vmem>>, %arg4: memref<1x8x1xf32, #tpu.memory_space<vmem>>, %arg5: memref<1x8x1xf32, #tpu.memory_space<vmem>>) attributes {dimension_semantics = [#tpu.dimension_semantics<parallel>], iteration_bounds = array<i64: 1>, scalar_prefetch = 0 : i64, scratch_operands = 0 : i64, tpu.core_type = #tpu.core_type<tc>, window_params = [{pipeline_mode = #tpu.pipeline_mode<synchronous>, transform_indices = @transform_0, window_bounds = array<i64: 8, 80>}, {transform_indices = @transform_1, window_bounds = array<i64: 80, 512>}, {transform_indices = @transform_2, window_bounds = array<i64: 8, 512>}, {transform_indices = @transform_3, window_bounds = array<i64: 1, 8, 1>}, {transform_indices = @transform_4, window_bounds = array<i64: 1, 8, 1>}]} {
    %c0 = arith.constant 0 : index
    %c0_0 = arith.constant 0 : index
    %0 = vector.load %arg1[%c0, %c0_0] : memref<8x80xbf16, #tpu.memory_space<vmem>>, vector<8x80xbf16>
    %c0_1 = arith.constant 0 : index
    %c0_2 = arith.constant 0 : index
    %1 = vector.load %arg2[%c0_1, %c0_2] : memref<80x512xbf16, #tpu.memory_space<vmem>>, vector<80x512xbf16>
    %cst = arith.constant dense<0.000000e+00> : vector<8x512xf32>
    %2 = tpu.matmul %0, %1, %cst {dimension_numbers = #tpu.dot_dimension_numbers<[1], [0], [0], [1], [0, 0, 1, 1], [], []>} : vector<8x80xbf16>, vector<80x512xbf16>, vector<8x512xf32> -> vector<8x512xf32>
    %3 = arith.truncf %2 : vector<8x512xf32> to vector<8x512xbf16>
    %c0_3 = arith.constant 0 : index
    %c0_4 = arith.constant 0 : index
    %4 = vector.load %arg3[%c0_3, %c0_4] : memref<8x512xbf16, #tpu.memory_space<vmem>>, vector<8x512xbf16>
    tpu.vector_store %arg3[%c0_3, %c0_4], %3 {strides = array<i32>} : memref<8x512xbf16, #tpu.memory_space<vmem>>, vector<8x512xbf16>,
    %cst_5 = arith.constant dense<0.000000e+00> : vector<8xf32>
    %5 = vector.multi_reduction <add>, %2, %cst_5 [1] : vector<8x512xf32> to vector<8xf32>
    %6 = vector.shape_cast %5 : vector<8xf32> to vector<8x1xf32>
    %c0_6 = arith.constant 0 : index
    %c0_7 = arith.constant 0 : index
    %c0_8 = arith.constant 0 : index
    %7 = vector.load %arg4[%c0_6, %c0_7, %c0_8] : memref<1x8x1xf32, #tpu.memory_space<vmem>>, vector<1x8x1xf32>
    %8 = vector.shape_cast %7 : vector<1x8x1xf32> to vector<8x1xf32>
    %9 = vector.shape_cast %6 : vector<8x1xf32> to vector<1x8x1xf32>
    tpu.vector_store %arg4[%c0_6, %c0_7, %c0_8], %9 {strides = array<i32>} : memref<1x8x1xf32, #tpu.memory_space<vmem>>, vector<1x8x1xf32>,
    %10 = arith.mulf %2, %2 : vector<8x512xf32>
    %cst_9 = arith.constant dense<0.000000e+00> : vector<8xf32>
    %11 = vector.multi_reduction <add>, %10, %cst_9 [1] : vector<8x512xf32> to vector<8xf32>
    %12 = vector.shape_cast %11 : vector<8xf32> to vector<8x1xf32>
    %c0_10 = arith.constant 0 : index
    %c0_11 = arith.constant 0 : index
    %c0_12 = arith.constant 0 : index
    %13 = vector.load %arg5[%c0_10, %c0_11, %c0_12] : memref<1x8x1xf32, #tpu.memory_space<vmem>>, vector<1x8x1xf32>
    %14 = vector.shape_cast %13 : vector<1x8x1xf32> to vector<8x1xf32>
    %15 = vector.shape_cast %12 : vector<8x1xf32> to vector<1x8x1xf32>
    tpu.vector_store %arg5[%c0_10, %c0_11, %c0_12], %15 {strides = array<i32>} : memref<1x8x1xf32, #tpu.memory_space<vmem>>, vector<1x8x1xf32>,
    return
  }
  func.func @transform_0(%arg0: i32) -> (i32, i32) {
    %c0_i32 = arith.constant 0 : i32
    %c0_i32_0 = arith.constant 0 : i32
    %c0_i32_1 = arith.constant 0 : i32
    return %c0_i32, %c0_i32_0 : i32, i32
  }
  func.func @transform_1(%arg0: i32) -> (i32, i32) {
    %c0_i32 = arith.constant 0 : i32
    %c0_i32_0 = arith.constant 0 : i32
    return %c0_i32, %arg0 : i32, i32
  }
  func.func @transform_2(%arg0: i32) -> (i32, i32) {
    %c0_i32 = arith.constant 0 : i32
    %c0_i32_0 = arith.constant 0 : i32
    return %c0_i32, %arg0 : i32, i32
  }
  func.func @transform_3(%arg0: i32) -> (i32, i32, i32) {
    %c0_i32 = arith.constant 0 : i32
    %c0_i32_0 = arith.constant 0 : i32
    %c0_i32_1 = arith.constant 0 : i32
    return %arg0, %c0_i32, %c0_i32_0 : i32, i32, i32
  }
  func.func @transform_4(%arg0: i32) -> (i32, i32, i32) {
    %c0_i32 = arith.constant 0 : i32
    %c0_i32_0 = arith.constant 0 : i32
    %c0_i32_1 = arith.constant 0 : i32
    return %arg0, %c0_i32, %c0_i32_0 : i32, i32, i32
  }
}

module attributes {stable_mosaic.version = 11 : i64} {
  func.func @_bn_relu_kernel(%arg0: i32, %arg1: memref<16x1xf32, #tpu.memory_space<vmem>>, %arg2: memref<16x1xf32, #tpu.memory_space<vmem>>, %arg3: memref<16x128xbf16, #tpu.memory_space<vmem>>, %arg4: memref<16x128xbf16, #tpu.memory_space<vmem>>) attributes {dimension_semantics = [#tpu.dimension_semantics<parallel>], iteration_bounds = array<i64: 1>, scalar_prefetch = 0 : i64, scratch_operands = 0 : i64, tpu.core_type = #tpu.core_type<tc>, window_params = [{pipeline_mode = #tpu.pipeline_mode<synchronous>, transform_indices = @transform_0, window_bounds = array<i64: 16, 1>}, {pipeline_mode = #tpu.pipeline_mode<synchronous>, transform_indices = @transform_1, window_bounds = array<i64: 16, 1>}, {transform_indices = @transform_2, window_bounds = array<i64: 16, 128>}, {transform_indices = @transform_3, window_bounds = array<i64: 16, 128>}]} {
    %c0 = arith.constant 0 : index
    %c0_0 = arith.constant 0 : index
    %0 = vector.load %arg3[%c0, %c0_0] : memref<16x128xbf16, #tpu.memory_space<vmem>>, vector<16x128xbf16>
    %1 = arith.extf %0 : vector<16x128xbf16> to vector<16x128xf32>
    %c0_1 = arith.constant 0 : index
    %c0_2 = arith.constant 0 : index
    %2 = vector.load %arg1[%c0_1, %c0_2] : memref<16x1xf32, #tpu.memory_space<vmem>>, vector<16x1xf32>
    %3 = vector.broadcast %2 : vector<16x1xf32> to vector<16x128xf32>
    %4 = arith.mulf %1, %3 : vector<16x128xf32>
    %c0_3 = arith.constant 0 : index
    %c0_4 = arith.constant 0 : index
    %5 = vector.load %arg2[%c0_3, %c0_4] : memref<16x1xf32, #tpu.memory_space<vmem>>, vector<16x1xf32>
    %6 = vector.broadcast %5 : vector<16x1xf32> to vector<16x128xf32>
    %7 = arith.addf %4, %6 : vector<16x128xf32>
    %cst = arith.constant 0.000000e+00 : f32
    %8 = vector.broadcast %cst : f32 to vector<16x128xf32>
    %9 = arith.maximumf %7, %8 : vector<16x128xf32>
    %10 = arith.truncf %9 : vector<16x128xf32> to vector<16x128xbf16>
    %c0_5 = arith.constant 0 : index
    %c0_6 = arith.constant 0 : index
    %11 = vector.load %arg4[%c0_5, %c0_6] : memref<16x128xbf16, #tpu.memory_space<vmem>>, vector<16x128xbf16>
    tpu.vector_store %arg4[%c0_5, %c0_6], %10 {strides = array<i32>} : memref<16x128xbf16, #tpu.memory_space<vmem>>, vector<16x128xbf16>,
    return
  }
  func.func @transform_0(%arg0: i32) -> (i32, i32) {
    %c0_i32 = arith.constant 0 : i32
    %c0_i32_0 = arith.constant 0 : i32
    %c0_i32_1 = arith.constant 0 : i32
    return %c0_i32, %c0_i32_0 : i32, i32
  }
  func.func @transform_1(%arg0: i32) -> (i32, i32) {
    %c0_i32 = arith.constant 0 : i32
    %c0_i32_0 = arith.constant 0 : i32
    %c0_i32_1 = arith.constant 0 : i32
    return %c0_i32, %c0_i32_0 : i32, i32
  }
  func.func @transform_2(%arg0: i32) -> (i32, i32) {
    %c0_i32 = arith.constant 0 : i32
    %c0_i32_0 = arith.constant 0 : i32
    return %c0_i32, %arg0 : i32, i32
  }
  func.func @transform_3(%arg0: i32) -> (i32, i32) {
    %c0_i32 = arith.constant 0 : i32
    %c0_i32_0 = arith.constant 0 : i32
    return %c0_i32, %arg0 : i32, i32
  }
}

module attributes {stable_mosaic.version = 11 : i64} {
  func.func @_matmul_stats_kernel(%arg0: i32, %arg1: memref<16x208xbf16, #tpu.memory_space<vmem>>, %arg2: memref<208x128xbf16, #tpu.memory_space<vmem>>, %arg3: memref<16x128xbf16, #tpu.memory_space<vmem>>, %arg4: memref<1x16x1xf32, #tpu.memory_space<vmem>>, %arg5: memref<1x16x1xf32, #tpu.memory_space<vmem>>) attributes {dimension_semantics = [#tpu.dimension_semantics<parallel>], iteration_bounds = array<i64: 1>, scalar_prefetch = 0 : i64, scratch_operands = 0 : i64, tpu.core_type = #tpu.core_type<tc>, window_params = [{pipeline_mode = #tpu.pipeline_mode<synchronous>, transform_indices = @transform_0, window_bounds = array<i64: 16, 208>}, {transform_indices = @transform_1, window_bounds = array<i64: 208, 128>}, {transform_indices = @transform_2, window_bounds = array<i64: 16, 128>}, {transform_indices = @transform_3, window_bounds = array<i64: 1, 16, 1>}, {transform_indices = @transform_4, window_bounds = array<i64: 1, 16, 1>}]} {
    %c0 = arith.constant 0 : index
    %c0_0 = arith.constant 0 : index
    %0 = vector.load %arg1[%c0, %c0_0] : memref<16x208xbf16, #tpu.memory_space<vmem>>, vector<16x208xbf16>
    %c0_1 = arith.constant 0 : index
    %c0_2 = arith.constant 0 : index
    %1 = vector.load %arg2[%c0_1, %c0_2] : memref<208x128xbf16, #tpu.memory_space<vmem>>, vector<208x128xbf16>
    %cst = arith.constant dense<0.000000e+00> : vector<16x128xf32>
    %2 = tpu.matmul %0, %1, %cst {dimension_numbers = #tpu.dot_dimension_numbers<[1], [0], [0], [1], [0, 0, 1, 1], [], []>} : vector<16x208xbf16>, vector<208x128xbf16>, vector<16x128xf32> -> vector<16x128xf32>
    %3 = arith.truncf %2 : vector<16x128xf32> to vector<16x128xbf16>
    %c0_3 = arith.constant 0 : index
    %c0_4 = arith.constant 0 : index
    %4 = vector.load %arg3[%c0_3, %c0_4] : memref<16x128xbf16, #tpu.memory_space<vmem>>, vector<16x128xbf16>
    tpu.vector_store %arg3[%c0_3, %c0_4], %3 {strides = array<i32>} : memref<16x128xbf16, #tpu.memory_space<vmem>>, vector<16x128xbf16>,
    %cst_5 = arith.constant dense<0.000000e+00> : vector<16xf32>
    %5 = vector.multi_reduction <add>, %2, %cst_5 [1] : vector<16x128xf32> to vector<16xf32>
    %6 = vector.shape_cast %5 : vector<16xf32> to vector<16x1xf32>
    %c0_6 = arith.constant 0 : index
    %c0_7 = arith.constant 0 : index
    %c0_8 = arith.constant 0 : index
    %7 = vector.load %arg4[%c0_6, %c0_7, %c0_8] : memref<1x16x1xf32, #tpu.memory_space<vmem>>, vector<1x16x1xf32>
    %8 = vector.shape_cast %7 : vector<1x16x1xf32> to vector<16x1xf32>
    %9 = vector.shape_cast %6 : vector<16x1xf32> to vector<1x16x1xf32>
    tpu.vector_store %arg4[%c0_6, %c0_7, %c0_8], %9 {strides = array<i32>} : memref<1x16x1xf32, #tpu.memory_space<vmem>>, vector<1x16x1xf32>,
    %10 = arith.mulf %2, %2 : vector<16x128xf32>
    %cst_9 = arith.constant dense<0.000000e+00> : vector<16xf32>
    %11 = vector.multi_reduction <add>, %10, %cst_9 [1] : vector<16x128xf32> to vector<16xf32>
    %12 = vector.shape_cast %11 : vector<16xf32> to vector<16x1xf32>
    %c0_10 = arith.constant 0 : index
    %c0_11 = arith.constant 0 : index
    %c0_12 = arith.constant 0 : index
    %13 = vector.load %arg5[%c0_10, %c0_11, %c0_12] : memref<1x16x1xf32, #tpu.memory_space<vmem>>, vector<1x16x1xf32>
    %14 = vector.shape_cast %13 : vector<1x16x1xf32> to vector<16x1xf32>
    %15 = vector.shape_cast %12 : vector<16x1xf32> to vector<1x16x1xf32>
    tpu.vector_store %arg5[%c0_10, %c0_11, %c0_12], %15 {strides = array<i32>} : memref<1x16x1xf32, #tpu.memory_space<vmem>>, vector<1x16x1xf32>,
    return
  }
  func.func @transform_0(%arg0: i32) -> (i32, i32) {
    %c0_i32 = arith.constant 0 : i32
    %c0_i32_0 = arith.constant 0 : i32
    %c0_i32_1 = arith.constant 0 : i32
    return %c0_i32, %c0_i32_0 : i32, i32
  }
  func.func @transform_1(%arg0: i32) -> (i32, i32) {
    %c0_i32 = arith.constant 0 : i32
    %c0_i32_0 = arith.constant 0 : i32
    return %c0_i32, %arg0 : i32, i32
  }
  func.func @transform_2(%arg0: i32) -> (i32, i32) {
    %c0_i32 = arith.constant 0 : i32
    %c0_i32_0 = arith.constant 0 : i32
    return %c0_i32, %arg0 : i32, i32
  }
  func.func @transform_3(%arg0: i32) -> (i32, i32, i32) {
    %c0_i32 = arith.constant 0 : i32
    %c0_i32_0 = arith.constant 0 : i32
    %c0_i32_1 = arith.constant 0 : i32
    return %arg0, %c0_i32, %c0_i32_0 : i32, i32, i32
  }
  func.func @transform_4(%arg0: i32) -> (i32, i32, i32) {
    %c0_i32 = arith.constant 0 : i32
    %c0_i32_0 = arith.constant 0 : i32
    %c0_i32_1 = arith.constant 0 : i32
    return %arg0, %c0_i32, %c0_i32_0 : i32, i32, i32
  }
}

module attributes {stable_mosaic.version = 11 : i64} {
  func.func @_matmul_stats_kernel(%arg0: i32, %arg1: memref<16x144xbf16, #tpu.memory_space<vmem>>, %arg2: memref<144x128xbf16, #tpu.memory_space<vmem>>, %arg3: memref<16x128xbf16, #tpu.memory_space<vmem>>, %arg4: memref<1x16x1xf32, #tpu.memory_space<vmem>>, %arg5: memref<1x16x1xf32, #tpu.memory_space<vmem>>) attributes {dimension_semantics = [#tpu.dimension_semantics<parallel>], iteration_bounds = array<i64: 1>, scalar_prefetch = 0 : i64, scratch_operands = 0 : i64, tpu.core_type = #tpu.core_type<tc>, window_params = [{pipeline_mode = #tpu.pipeline_mode<synchronous>, transform_indices = @transform_0, window_bounds = array<i64: 16, 144>}, {transform_indices = @transform_1, window_bounds = array<i64: 144, 128>}, {transform_indices = @transform_2, window_bounds = array<i64: 16, 128>}, {transform_indices = @transform_3, window_bounds = array<i64: 1, 16, 1>}, {transform_indices = @transform_4, window_bounds = array<i64: 1, 16, 1>}]} {
    %c0 = arith.constant 0 : index
    %c0_0 = arith.constant 0 : index
    %0 = vector.load %arg1[%c0, %c0_0] : memref<16x144xbf16, #tpu.memory_space<vmem>>, vector<16x144xbf16>
    %c0_1 = arith.constant 0 : index
    %c0_2 = arith.constant 0 : index
    %1 = vector.load %arg2[%c0_1, %c0_2] : memref<144x128xbf16, #tpu.memory_space<vmem>>, vector<144x128xbf16>
    %cst = arith.constant dense<0.000000e+00> : vector<16x128xf32>
    %2 = tpu.matmul %0, %1, %cst {dimension_numbers = #tpu.dot_dimension_numbers<[1], [0], [0], [1], [0, 0, 1, 1], [], []>} : vector<16x144xbf16>, vector<144x128xbf16>, vector<16x128xf32> -> vector<16x128xf32>
    %3 = arith.truncf %2 : vector<16x128xf32> to vector<16x128xbf16>
    %c0_3 = arith.constant 0 : index
    %c0_4 = arith.constant 0 : index
    %4 = vector.load %arg3[%c0_3, %c0_4] : memref<16x128xbf16, #tpu.memory_space<vmem>>, vector<16x128xbf16>
    tpu.vector_store %arg3[%c0_3, %c0_4], %3 {strides = array<i32>} : memref<16x128xbf16, #tpu.memory_space<vmem>>, vector<16x128xbf16>,
    %cst_5 = arith.constant dense<0.000000e+00> : vector<16xf32>
    %5 = vector.multi_reduction <add>, %2, %cst_5 [1] : vector<16x128xf32> to vector<16xf32>
    %6 = vector.shape_cast %5 : vector<16xf32> to vector<16x1xf32>
    %c0_6 = arith.constant 0 : index
    %c0_7 = arith.constant 0 : index
    %c0_8 = arith.constant 0 : index
    %7 = vector.load %arg4[%c0_6, %c0_7, %c0_8] : memref<1x16x1xf32, #tpu.memory_space<vmem>>, vector<1x16x1xf32>
    %8 = vector.shape_cast %7 : vector<1x16x1xf32> to vector<16x1xf32>
    %9 = vector.shape_cast %6 : vector<16x1xf32> to vector<1x16x1xf32>
    tpu.vector_store %arg4[%c0_6, %c0_7, %c0_8], %9 {strides = array<i32>} : memref<1x16x1xf32, #tpu.memory_space<vmem>>, vector<1x16x1xf32>,
    %10 = arith.mulf %2, %2 : vector<16x128xf32>
    %cst_9 = arith.constant dense<0.000000e+00> : vector<16xf32>
    %11 = vector.multi_reduction <add>, %10, %cst_9 [1] : vector<16x128xf32> to vector<16xf32>
    %12 = vector.shape_cast %11 : vector<16xf32> to vector<16x1xf32>
    %c0_10 = arith.constant 0 : index
    %c0_11 = arith.constant 0 : index
    %c0_12 = arith.constant 0 : index
    %13 = vector.load %arg5[%c0_10, %c0_11, %c0_12] : memref<1x16x1xf32, #tpu.memory_space<vmem>>, vector<1x16x1xf32>
    %14 = vector.shape_cast %13 : vector<1x16x1xf32> to vector<16x1xf32>
    %15 = vector.shape_cast %12 : vector<16x1xf32> to vector<1x16x1xf32>
    tpu.vector_store %arg5[%c0_10, %c0_11, %c0_12], %15 {strides = array<i32>} : memref<1x16x1xf32, #tpu.memory_space<vmem>>, vector<1x16x1xf32>,
    return
  }
  func.func @transform_0(%arg0: i32) -> (i32, i32) {
    %c0_i32 = arith.constant 0 : i32
    %c0_i32_0 = arith.constant 0 : i32
    %c0_i32_1 = arith.constant 0 : i32
    return %c0_i32, %c0_i32_0 : i32, i32
  }
  func.func @transform_1(%arg0: i32) -> (i32, i32) {
    %c0_i32 = arith.constant 0 : i32
    %c0_i32_0 = arith.constant 0 : i32
    return %c0_i32, %arg0 : i32, i32
  }
  func.func @transform_2(%arg0: i32) -> (i32, i32) {
    %c0_i32 = arith.constant 0 : i32
    %c0_i32_0 = arith.constant 0 : i32
    return %c0_i32, %arg0 : i32, i32
  }
  func.func @transform_3(%arg0: i32) -> (i32, i32, i32) {
    %c0_i32 = arith.constant 0 : i32
    %c0_i32_0 = arith.constant 0 : i32
    %c0_i32_1 = arith.constant 0 : i32
    return %arg0, %c0_i32, %c0_i32_0 : i32, i32, i32
  }
  func.func @transform_4(%arg0: i32) -> (i32, i32, i32) {
    %c0_i32 = arith.constant 0 : i32
    %c0_i32_0 = arith.constant 0 : i32
    %c0_i32_1 = arith.constant 0 : i32
    return %arg0, %c0_i32, %c0_i32_0 : i32, i32, i32
  }
}

module attributes {stable_mosaic.version = 11 : i64} {
  func.func @_matmul_stats_kernel(%arg0: i32, %arg1: memref<32x400xbf16, #tpu.memory_space<vmem>>, %arg2: memref<400x128xbf16, #tpu.memory_space<vmem>>, %arg3: memref<32x128xbf16, #tpu.memory_space<vmem>>, %arg4: memref<1x32x1xf32, #tpu.memory_space<vmem>>, %arg5: memref<1x32x1xf32, #tpu.memory_space<vmem>>) attributes {dimension_semantics = [#tpu.dimension_semantics<parallel>], iteration_bounds = array<i64: 1>, scalar_prefetch = 0 : i64, scratch_operands = 0 : i64, tpu.core_type = #tpu.core_type<tc>, window_params = [{pipeline_mode = #tpu.pipeline_mode<synchronous>, transform_indices = @transform_0, window_bounds = array<i64: 32, 400>}, {transform_indices = @transform_1, window_bounds = array<i64: 400, 128>}, {transform_indices = @transform_2, window_bounds = array<i64: 32, 128>}, {transform_indices = @transform_3, window_bounds = array<i64: 1, 32, 1>}, {transform_indices = @transform_4, window_bounds = array<i64: 1, 32, 1>}]} {
    %c0 = arith.constant 0 : index
    %c0_0 = arith.constant 0 : index
    %0 = vector.load %arg1[%c0, %c0_0] : memref<32x400xbf16, #tpu.memory_space<vmem>>, vector<32x400xbf16>
    %c0_1 = arith.constant 0 : index
    %c0_2 = arith.constant 0 : index
    %1 = vector.load %arg2[%c0_1, %c0_2] : memref<400x128xbf16, #tpu.memory_space<vmem>>, vector<400x128xbf16>
    %cst = arith.constant dense<0.000000e+00> : vector<32x128xf32>
    %2 = tpu.matmul %0, %1, %cst {dimension_numbers = #tpu.dot_dimension_numbers<[1], [0], [0], [1], [0, 0, 1, 1], [], []>} : vector<32x400xbf16>, vector<400x128xbf16>, vector<32x128xf32> -> vector<32x128xf32>
    %3 = arith.truncf %2 : vector<32x128xf32> to vector<32x128xbf16>
    %c0_3 = arith.constant 0 : index
    %c0_4 = arith.constant 0 : index
    %4 = vector.load %arg3[%c0_3, %c0_4] : memref<32x128xbf16, #tpu.memory_space<vmem>>, vector<32x128xbf16>
    tpu.vector_store %arg3[%c0_3, %c0_4], %3 {strides = array<i32>} : memref<32x128xbf16, #tpu.memory_space<vmem>>, vector<32x128xbf16>,
    %cst_5 = arith.constant dense<0.000000e+00> : vector<32xf32>
    %5 = vector.multi_reduction <add>, %2, %cst_5 [1] : vector<32x128xf32> to vector<32xf32>
    %6 = vector.shape_cast %5 : vector<32xf32> to vector<32x1xf32>
    %c0_6 = arith.constant 0 : index
    %c0_7 = arith.constant 0 : index
    %c0_8 = arith.constant 0 : index
    %7 = vector.load %arg4[%c0_6, %c0_7, %c0_8] : memref<1x32x1xf32, #tpu.memory_space<vmem>>, vector<1x32x1xf32>
    %8 = vector.shape_cast %7 : vector<1x32x1xf32> to vector<32x1xf32>
    %9 = vector.shape_cast %6 : vector<32x1xf32> to vector<1x32x1xf32>
    tpu.vector_store %arg4[%c0_6, %c0_7, %c0_8], %9 {strides = array<i32>} : memref<1x32x1xf32, #tpu.memory_space<vmem>>, vector<1x32x1xf32>,
    %10 = arith.mulf %2, %2 : vector<32x128xf32>
    %cst_9 = arith.constant dense<0.000000e+00> : vector<32xf32>
    %11 = vector.multi_reduction <add>, %10, %cst_9 [1] : vector<32x128xf32> to vector<32xf32>
    %12 = vector.shape_cast %11 : vector<32xf32> to vector<32x1xf32>
    %c0_10 = arith.constant 0 : index
    %c0_11 = arith.constant 0 : index
    %c0_12 = arith.constant 0 : index
    %13 = vector.load %arg5[%c0_10, %c0_11, %c0_12] : memref<1x32x1xf32, #tpu.memory_space<vmem>>, vector<1x32x1xf32>
    %14 = vector.shape_cast %13 : vector<1x32x1xf32> to vector<32x1xf32>
    %15 = vector.shape_cast %12 : vector<32x1xf32> to vector<1x32x1xf32>
    tpu.vector_store %arg5[%c0_10, %c0_11, %c0_12], %15 {strides = array<i32>} : memref<1x32x1xf32, #tpu.memory_space<vmem>>, vector<1x32x1xf32>,
    return
  }
  func.func @transform_0(%arg0: i32) -> (i32, i32) {
    %c0_i32 = arith.constant 0 : i32
    %c0_i32_0 = arith.constant 0 : i32
    %c0_i32_1 = arith.constant 0 : i32
    return %c0_i32, %c0_i32_0 : i32, i32
  }
  func.func @transform_1(%arg0: i32) -> (i32, i32) {
    %c0_i32 = arith.constant 0 : i32
    %c0_i32_0 = arith.constant 0 : i32
    return %c0_i32, %arg0 : i32, i32
  }
  func.func @transform_2(%arg0: i32) -> (i32, i32) {
    %c0_i32 = arith.constant 0 : i32
    %c0_i32_0 = arith.constant 0 : i32
    return %c0_i32, %arg0 : i32, i32
  }
  func.func @transform_3(%arg0: i32) -> (i32, i32, i32) {
    %c0_i32 = arith.constant 0 : i32
    %c0_i32_0 = arith.constant 0 : i32
    %c0_i32_1 = arith.constant 0 : i32
    return %arg0, %c0_i32, %c0_i32_0 : i32, i32, i32
  }
  func.func @transform_4(%arg0: i32) -> (i32, i32, i32) {
    %c0_i32 = arith.constant 0 : i32
    %c0_i32_0 = arith.constant 0 : i32
    %c0_i32_1 = arith.constant 0 : i32
    return %arg0, %c0_i32, %c0_i32_0 : i32, i32, i32
  }
}

module attributes {stable_mosaic.version = 11 : i64} {
  func.func @_bn_relu_kernel(%arg0: i32, %arg1: memref<32x1xf32, #tpu.memory_space<vmem>>, %arg2: memref<32x1xf32, #tpu.memory_space<vmem>>, %arg3: memref<32x128xbf16, #tpu.memory_space<vmem>>, %arg4: memref<32x128xbf16, #tpu.memory_space<vmem>>) attributes {dimension_semantics = [#tpu.dimension_semantics<parallel>], iteration_bounds = array<i64: 1>, scalar_prefetch = 0 : i64, scratch_operands = 0 : i64, tpu.core_type = #tpu.core_type<tc>, window_params = [{pipeline_mode = #tpu.pipeline_mode<synchronous>, transform_indices = @transform_0, window_bounds = array<i64: 32, 1>}, {pipeline_mode = #tpu.pipeline_mode<synchronous>, transform_indices = @transform_1, window_bounds = array<i64: 32, 1>}, {transform_indices = @transform_2, window_bounds = array<i64: 32, 128>}, {transform_indices = @transform_3, window_bounds = array<i64: 32, 128>}]} {
    %c0 = arith.constant 0 : index
    %c0_0 = arith.constant 0 : index
    %0 = vector.load %arg3[%c0, %c0_0] : memref<32x128xbf16, #tpu.memory_space<vmem>>, vector<32x128xbf16>
    %1 = arith.extf %0 : vector<32x128xbf16> to vector<32x128xf32>
    %c0_1 = arith.constant 0 : index
    %c0_2 = arith.constant 0 : index
    %2 = vector.load %arg1[%c0_1, %c0_2] : memref<32x1xf32, #tpu.memory_space<vmem>>, vector<32x1xf32>
    %3 = vector.broadcast %2 : vector<32x1xf32> to vector<32x128xf32>
    %4 = arith.mulf %1, %3 : vector<32x128xf32>
    %c0_3 = arith.constant 0 : index
    %c0_4 = arith.constant 0 : index
    %5 = vector.load %arg2[%c0_3, %c0_4] : memref<32x1xf32, #tpu.memory_space<vmem>>, vector<32x1xf32>
    %6 = vector.broadcast %5 : vector<32x1xf32> to vector<32x128xf32>
    %7 = arith.addf %4, %6 : vector<32x128xf32>
    %cst = arith.constant 0.000000e+00 : f32
    %8 = vector.broadcast %cst : f32 to vector<32x128xf32>
    %9 = arith.maximumf %7, %8 : vector<32x128xf32>
    %10 = arith.truncf %9 : vector<32x128xf32> to vector<32x128xbf16>
    %c0_5 = arith.constant 0 : index
    %c0_6 = arith.constant 0 : index
    %11 = vector.load %arg4[%c0_5, %c0_6] : memref<32x128xbf16, #tpu.memory_space<vmem>>, vector<32x128xbf16>
    tpu.vector_store %arg4[%c0_5, %c0_6], %10 {strides = array<i32>} : memref<32x128xbf16, #tpu.memory_space<vmem>>, vector<32x128xbf16>,
    return
  }
  func.func @transform_0(%arg0: i32) -> (i32, i32) {
    %c0_i32 = arith.constant 0 : i32
    %c0_i32_0 = arith.constant 0 : i32
    %c0_i32_1 = arith.constant 0 : i32
    return %c0_i32, %c0_i32_0 : i32, i32
  }
  func.func @transform_1(%arg0: i32) -> (i32, i32) {
    %c0_i32 = arith.constant 0 : i32
    %c0_i32_0 = arith.constant 0 : i32
    %c0_i32_1 = arith.constant 0 : i32
    return %c0_i32, %c0_i32_0 : i32, i32
  }
  func.func @transform_2(%arg0: i32) -> (i32, i32) {
    %c0_i32 = arith.constant 0 : i32
    %c0_i32_0 = arith.constant 0 : i32
    return %c0_i32, %arg0 : i32, i32
  }
  func.func @transform_3(%arg0: i32) -> (i32, i32) {
    %c0_i32 = arith.constant 0 : i32
    %c0_i32_0 = arith.constant 0 : i32
    return %c0_i32, %arg0 : i32, i32
  }
}

module attributes {stable_mosaic.version = 11 : i64} {
  func.func @_matmul_stats_kernel(%arg0: i32, %arg1: memref<32x288xbf16, #tpu.memory_space<vmem>>, %arg2: memref<288x128xbf16, #tpu.memory_space<vmem>>, %arg3: memref<32x128xbf16, #tpu.memory_space<vmem>>, %arg4: memref<1x32x1xf32, #tpu.memory_space<vmem>>, %arg5: memref<1x32x1xf32, #tpu.memory_space<vmem>>) attributes {dimension_semantics = [#tpu.dimension_semantics<parallel>], iteration_bounds = array<i64: 1>, scalar_prefetch = 0 : i64, scratch_operands = 0 : i64, tpu.core_type = #tpu.core_type<tc>, window_params = [{pipeline_mode = #tpu.pipeline_mode<synchronous>, transform_indices = @transform_0, window_bounds = array<i64: 32, 288>}, {transform_indices = @transform_1, window_bounds = array<i64: 288, 128>}, {transform_indices = @transform_2, window_bounds = array<i64: 32, 128>}, {transform_indices = @transform_3, window_bounds = array<i64: 1, 32, 1>}, {transform_indices = @transform_4, window_bounds = array<i64: 1, 32, 1>}]} {
    %c0 = arith.constant 0 : index
    %c0_0 = arith.constant 0 : index
    %0 = vector.load %arg1[%c0, %c0_0] : memref<32x288xbf16, #tpu.memory_space<vmem>>, vector<32x288xbf16>
    %c0_1 = arith.constant 0 : index
    %c0_2 = arith.constant 0 : index
    %1 = vector.load %arg2[%c0_1, %c0_2] : memref<288x128xbf16, #tpu.memory_space<vmem>>, vector<288x128xbf16>
    %cst = arith.constant dense<0.000000e+00> : vector<32x128xf32>
    %2 = tpu.matmul %0, %1, %cst {dimension_numbers = #tpu.dot_dimension_numbers<[1], [0], [0], [1], [0, 0, 1, 1], [], []>} : vector<32x288xbf16>, vector<288x128xbf16>, vector<32x128xf32> -> vector<32x128xf32>
    %3 = arith.truncf %2 : vector<32x128xf32> to vector<32x128xbf16>
    %c0_3 = arith.constant 0 : index
    %c0_4 = arith.constant 0 : index
    %4 = vector.load %arg3[%c0_3, %c0_4] : memref<32x128xbf16, #tpu.memory_space<vmem>>, vector<32x128xbf16>
    tpu.vector_store %arg3[%c0_3, %c0_4], %3 {strides = array<i32>} : memref<32x128xbf16, #tpu.memory_space<vmem>>, vector<32x128xbf16>,
    %cst_5 = arith.constant dense<0.000000e+00> : vector<32xf32>
    %5 = vector.multi_reduction <add>, %2, %cst_5 [1] : vector<32x128xf32> to vector<32xf32>
    %6 = vector.shape_cast %5 : vector<32xf32> to vector<32x1xf32>
    %c0_6 = arith.constant 0 : index
    %c0_7 = arith.constant 0 : index
    %c0_8 = arith.constant 0 : index
    %7 = vector.load %arg4[%c0_6, %c0_7, %c0_8] : memref<1x32x1xf32, #tpu.memory_space<vmem>>, vector<1x32x1xf32>
    %8 = vector.shape_cast %7 : vector<1x32x1xf32> to vector<32x1xf32>
    %9 = vector.shape_cast %6 : vector<32x1xf32> to vector<1x32x1xf32>
    tpu.vector_store %arg4[%c0_6, %c0_7, %c0_8], %9 {strides = array<i32>} : memref<1x32x1xf32, #tpu.memory_space<vmem>>, vector<1x32x1xf32>,
    %10 = arith.mulf %2, %2 : vector<32x128xf32>
    %cst_9 = arith.constant dense<0.000000e+00> : vector<32xf32>
    %11 = vector.multi_reduction <add>, %10, %cst_9 [1] : vector<32x128xf32> to vector<32xf32>
    %12 = vector.shape_cast %11 : vector<32xf32> to vector<32x1xf32>
    %c0_10 = arith.constant 0 : index
    %c0_11 = arith.constant 0 : index
    %c0_12 = arith.constant 0 : index
    %13 = vector.load %arg5[%c0_10, %c0_11, %c0_12] : memref<1x32x1xf32, #tpu.memory_space<vmem>>, vector<1x32x1xf32>
    %14 = vector.shape_cast %13 : vector<1x32x1xf32> to vector<32x1xf32>
    %15 = vector.shape_cast %12 : vector<32x1xf32> to vector<1x32x1xf32>
    tpu.vector_store %arg5[%c0_10, %c0_11, %c0_12], %15 {strides = array<i32>} : memref<1x32x1xf32, #tpu.memory_space<vmem>>, vector<1x32x1xf32>,
    return
  }
  func.func @transform_0(%arg0: i32) -> (i32, i32) {
    %c0_i32 = arith.constant 0 : i32
    %c0_i32_0 = arith.constant 0 : i32
    %c0_i32_1 = arith.constant 0 : i32
    return %c0_i32, %c0_i32_0 : i32, i32
  }
  func.func @transform_1(%arg0: i32) -> (i32, i32) {
    %c0_i32 = arith.constant 0 : i32
    %c0_i32_0 = arith.constant 0 : i32
    return %c0_i32, %arg0 : i32, i32
  }
  func.func @transform_2(%arg0: i32) -> (i32, i32) {
    %c0_i32 = arith.constant 0 : i32
    %c0_i32_0 = arith.constant 0 : i32
    return %c0_i32, %arg0 : i32, i32
  }
  func.func @transform_3(%arg0: i32) -> (i32, i32, i32) {
    %c0_i32 = arith.constant 0 : i32
    %c0_i32_0 = arith.constant 0 : i32
    %c0_i32_1 = arith.constant 0 : i32
    return %arg0, %c0_i32, %c0_i32_0 : i32, i32, i32
  }
  func.func @transform_4(%arg0: i32) -> (i32, i32, i32) {
    %c0_i32 = arith.constant 0 : i32
    %c0_i32_0 = arith.constant 0 : i32
    %c0_i32_1 = arith.constant 0 : i32
    return %arg0, %c0_i32, %c0_i32_0 : i32, i32, i32
  }
}

module attributes {stable_mosaic.version = 11 : i64} {
  func.func @_matmul_bias_kernel(%arg0: i32, %arg1: memref<32x288xbf16, #tpu.memory_space<vmem>>, %arg2: memref<32x1xf32, #tpu.memory_space<vmem>>, %arg3: memref<288x128xbf16, #tpu.memory_space<vmem>>, %arg4: memref<32x128xf32, #tpu.memory_space<vmem>>) attributes {dimension_semantics = [#tpu.dimension_semantics<parallel>], iteration_bounds = array<i64: 1>, scalar_prefetch = 0 : i64, scratch_operands = 0 : i64, tpu.core_type = #tpu.core_type<tc>, window_params = [{pipeline_mode = #tpu.pipeline_mode<synchronous>, transform_indices = @transform_0, window_bounds = array<i64: 32, 288>}, {pipeline_mode = #tpu.pipeline_mode<synchronous>, transform_indices = @transform_1, window_bounds = array<i64: 32, 1>}, {transform_indices = @transform_2, window_bounds = array<i64: 288, 128>}, {transform_indices = @transform_3, window_bounds = array<i64: 32, 128>}]} {
    %c0 = arith.constant 0 : index
    %c0_0 = arith.constant 0 : index
    %0 = vector.load %arg1[%c0, %c0_0] : memref<32x288xbf16, #tpu.memory_space<vmem>>, vector<32x288xbf16>
    %c0_1 = arith.constant 0 : index
    %c0_2 = arith.constant 0 : index
    %1 = vector.load %arg3[%c0_1, %c0_2] : memref<288x128xbf16, #tpu.memory_space<vmem>>, vector<288x128xbf16>
    %cst = arith.constant dense<0.000000e+00> : vector<32x128xf32>
    %2 = tpu.matmul %0, %1, %cst {dimension_numbers = #tpu.dot_dimension_numbers<[1], [0], [0], [1], [0, 0, 1, 1], [], []>} : vector<32x288xbf16>, vector<288x128xbf16>, vector<32x128xf32> -> vector<32x128xf32>
    %c0_3 = arith.constant 0 : index
    %c0_4 = arith.constant 0 : index
    %3 = vector.load %arg2[%c0_3, %c0_4] : memref<32x1xf32, #tpu.memory_space<vmem>>, vector<32x1xf32>
    %4 = vector.broadcast %3 : vector<32x1xf32> to vector<32x128xf32>
    %5 = arith.addf %2, %4 : vector<32x128xf32>
    %c0_5 = arith.constant 0 : index
    %c0_6 = arith.constant 0 : index
    %6 = vector.load %arg4[%c0_5, %c0_6] : memref<32x128xf32, #tpu.memory_space<vmem>>, vector<32x128xf32>
    tpu.vector_store %arg4[%c0_5, %c0_6], %5 {strides = array<i32>} : memref<32x128xf32, #tpu.memory_space<vmem>>, vector<32x128xf32>,
    return
  }
  func.func @transform_0(%arg0: i32) -> (i32, i32) {
    %c0_i32 = arith.constant 0 : i32
    %c0_i32_0 = arith.constant 0 : i32
    %c0_i32_1 = arith.constant 0 : i32
    return %c0_i32, %c0_i32_0 : i32, i32
  }
  func.func @transform_1(%arg0: i32) -> (i32, i32) {
    %c0_i32 = arith.constant 0 : i32
    %c0_i32_0 = arith.constant 0 : i32
    %c0_i32_1 = arith.constant 0 : i32
    return %c0_i32, %c0_i32_0 : i32, i32
  }
  func.func @transform_2(%arg0: i32) -> (i32, i32) {
    %c0_i32 = arith.constant 0 : i32
    %c0_i32_0 = arith.constant 0 : i32
    return %c0_i32, %arg0 : i32, i32
  }
  func.func @transform_3(%arg0: i32) -> (i32, i32) {
    %c0_i32 = arith.constant 0 : i32
    %c0_i32_0 = arith.constant 0 : i32
    return %c0_i32, %arg0 : i32, i32
  }
}

</mosaic_0001>

<llo_original>
// kernel: featurenet_forward.15
$region0: #{featurenet_forward.15}
  #allocation0 [shape = 'u32[]', space=smem, size = 0x4, offset = 0x4, fixed_abs, tag = 'smem constant byte address 0x4 - core index']
  #allocation1 [shape = 'u32[144,128]{1,0:T(1,128)}', space=vmem, size = 0x12000, scoped, tag = 'internal scratch']
  %s0 = inlined_call_operand.vmem [shape: bf16[8,32], index: 0, kind: input, shape index: {}]
  %s1 = inlined_call_operand.vmem [shape: bf16[32,512], index: 1, kind: input, shape index: {}]
  %s2 = inlined_call_operand.vmem [shape: bf16[8,512], index: 2, kind: output, shape index: {0}]
  %s3 = inlined_call_operand.vmem [shape: f32[1,8,1], index: 3, kind: output, shape index: {1}]
  %s4 = inlined_call_operand.vmem [shape: f32[1,8,1], index: 4, kind: output, shape index: {2}]
  %5 = xla_tuple %s2, %s3, %s4
  %s6 = sld [smem:[#allocation0]]
  $region34: #{featurenet_forward.15} parent=0
    _
  %s8 = ssub.s32 1, %s6
  %s9 = scalar_select 0, %s8, %s6
  // Predicated region
  $region2: #{featurenet_forward.15} parent=0 // pred_check
    _
  $region3: #{featurenet_forward.15} parent=0 // pred_check_branch
    %11 = sbr.rel (0) target = $region5
  $region4: #{featurenet_forward.15} parent=0 // pred_region
    _
  $region5: #{featurenet_forward.15} parent=0 // pred_fallthru
    _
  // Predicated region
  $region6: #{featurenet_forward.15} parent=0 // pred_check
    _
  $region7: #{featurenet_forward.15} parent=0 // pred_check_branch
    %13 = sbr.rel (0) target = $region9
  $region8: #{featurenet_forward.15} parent=0 // pred_region
    _
  $region9: #{featurenet_forward.15} parent=0 // pred_fallthru
    _
  %v15 = vld [vmem:[%s0] sm:$0xf]
  %v16 = vld [vmem:[%s1] sm:$0xff]
  %v17 = vld [vmem:[%s1 + $0x8] sm:$0xff]
  %v18 = vld [vmem:[%s1 + $0x10] sm:$0xff]
  %v19 = vld [vmem:[%s1 + $0x18] sm:$0xff]
  %v20 = vld [vmem:[%s1 + $0x20] sm:$0xff]
  %v21 = vld [vmem:[%s1 + $0x28] sm:$0xff]
  %v22 = vld [vmem:[%s1 + $0x30] sm:$0xff]
  %v23 = vld [vmem:[%s1 + $0x38] sm:$0xff]
  %v32 = vunpack.c.l.b16 %v16
  %v33 = vunpack.c.h.b16 %v16
  %v34 = vunpack.c.l.b16 %v17
  %v35 = vunpack.c.h.b16 %v17
  %v36 = vunpack.c.l.b16 %v18
  %v37 = vunpack.c.h.b16 %v18
  %v38 = vunpack.c.l.b16 %v19
  %v39 = vunpack.c.h.b16 %v19
  %v40 = vunpack.c.l.b16 %v20
  %v41 = vunpack.c.h.b16 %v20
  %v42 = vunpack.c.l.b16 %v21
  %v43 = vunpack.c.h.b16 %v21
  %v44 = vunpack.c.l.b16 %v22
  %v45 = vunpack.c.h.b16 %v22
  %v46 = vunpack.c.l.b16 %v23
  %v47 = vunpack.c.h.b16 %v23
  %v48 = vpack.c.b16 %v36, %v32
  %v49 = vpack.c.b16 %v37, %v33
  %v50 = vpack.c.b16 %v38, %v34
  %v51 = vpack.c.b16 %v39, %v35
  %v52 = vpack.c.b16 %v44, %v40
  %v53 = vpack.c.b16 %v45, %v41
  %v54 = vpack.c.b16 %v46, %v42
  %v55 = vpack.c.b16 %v47, %v43
  %vm64 = vcmask 261120
  %v66 = vsel %vm64, %v15, 0
  %68 = vmatprep.subr.bf16.mxu0 0
  %69 = vmatpush1.bf16.msra.mxu0 0
  %70 = vmatprep.subr.bf16.mxu0 0
  %71 = vmatpush1.bf16.msra.mxu0 0
  %72 = vmatprep.subr.bf16.mxu0 0
  %73 = vmatpush1.bf16.msra.mxu0 0
  %74 = vmatprep.subr.bf16.mxu0 0
  %75 = vmatpush1.bf16.msra.mxu0 0
  %76 = vmatprep.subr.bf16.mxu0 0
  %77 = vmatpush1.bf16.msra.mxu0 0
  %78 = vmatprep.subr.bf16.mxu0 0
  %79 = vmatpush1.bf16.msra.mxu0 0
  %80 = vmatprep.subr.bf16.mxu0 %v53
  %81 = vmatpush1.bf16.msra.mxu0 %v52
  %82 = vmatprep.subr.bf16.mxu0 %v49
  %83 = vmatpush1.bf16.msra.mxu0 %v48
  %84 = vmatprep.subr.bf16.mxu0 0
  %85 = vmatpush2.bf16.msra.mxu0 0
  %86 = vmatprep.subr.bf16.mxu0 0
  %87 = vmatpush2.bf16.msra.mxu0 0
  %88 = vmatprep.subr.bf16.mxu0 0
  %89 = vmatpush2.bf16.msra.mxu0 0
  %90 = vmatprep.subr.bf16.mxu0 0
  %91 = vmatpush2.bf16.msra.mxu0 0
  %92 = vmatprep.subr.bf16.mxu0 0
  %93 = vmatpush2.bf16.msra.mxu0 0
  %94 = vmatprep.subr.bf16.mxu0 0
  %95 = vmatpush2.bf16.msra.mxu0 0
  %96 = vmatprep.subr.bf16.mxu0 0
  %97 = vmatpush2.bf16.msra.mxu0 0
  %98 = vmatprep.subr.bf16.mxu0 0
  %99 = vmatpush2.bf16.msra.mxu0 0
  %100 = vmatprep.mubr.bf16.mxu0 0
  %101 = vmatmul.mubr.bf16.gmra.mxu0 %v66
  %v102 = vpop.f32.mrf.mxu0
  %v103 = vadd.f32 0.0, %v102
  %v104 = vpop.f32.mrf.mxu0
  %v105 = vadd.f32 0.0, %v104
  %v106 = vpop.f32.mrf.mxu0
  %v107 = vpop.f32.mrf.mxu0
  %108 = vdwg.mxu0
  %109 = vmatprep.subr.bf16.mxu0 0
  %110 = vmatpush1.bf16.msra.mxu0 0
  %111 = vmatprep.subr.bf16.mxu0 0
  %112 = vmatpush1.bf16.msra.mxu0 0
  %113 = vmatprep.subr.bf16.mxu0 0
  %114 = vmatpush1.bf16.msra.mxu0 0
  %115 = vmatprep.subr.bf16.mxu0 0
  %116 = vmatpush1.bf16.msra.mxu0 0
  %117 = vmatprep.subr.bf16.mxu0 0
  %118 = vmatpush1.bf16.msra.mxu0 0
  %119 = vmatprep.subr.bf16.mxu0 0
  %120 = vmatpush1.bf16.msra.mxu0 0
  %121 = vmatprep.subr.bf16.mxu0 %v55
  %122 = vmatpush1.bf16.msra.mxu0 %v54
  %123 = vmatprep.subr.bf16.mxu0 %v51
  %124 = vmatpush1.bf16.msra.mxu0 %v50
  %125 = vmatprep.subr.bf16.mxu0 0
  %126 = vmatpush2.bf16.msra.mxu0 0
  %127 = vmatprep.subr.bf16.mxu0 0
  %128 = vmatpush2.bf16.msra.mxu0 0
  %129 = vmatprep.subr.bf16.mxu0 0
  %130 = vmatpush2.bf16.msra.mxu0 0
  %131 = vmatprep.subr.bf16.mxu0 0
  %132 = vmatpush2.bf16.msra.mxu0 0
  %133 = vmatprep.subr.bf16.mxu0 0
  %134 = vmatpush2.bf16.msra.mxu0 0
  %135 = vmatprep.subr.bf16.mxu0 0
  %136 = vmatpush2.bf16.msra.mxu0 0
  %137 = vmatprep.subr.bf16.mxu0 0
  %138 = vmatpush2.bf16.msra.mxu0 0
  %139 = vmatprep.subr.bf16.mxu0 0
  %140 = vmatpush2.bf16.msra.mxu0 0
  %141 = vmatprep.mubr.bf16.mxu0 0
  %142 = vmatmul.mubr.bf16.gmra.mxu0 %v66
  %v143 = vpop.f32.mrf.mxu0
  %v144 = vadd.f32 0.0, %v143
  %v145 = vpop.f32.mrf.mxu0
  %v146 = vadd.f32 0.0, %v145
  %v147 = vpop.f32.mrf.mxu0
  %v148 = vpop.f32.mrf.mxu0
  %149 = vdwg.mxu0
  %v150 = vpack.c.bf16 %v103, %v103
  %v151 = vpack.c.bf16 %v105, %v105
  %v152 = vpack.c.bf16 %v144, %v144
  %v153 = vpack.c.bf16 %v146, %v146
  %v158 = vunpack.c.l.b16 %v150
  %v159 = vunpack.c.l.b16 %v151
  %v160 = vunpack.c.l.b16 %v152
  %v161 = vunpack.c.l.b16 %v153
  %v162 = vpack.c.b16 %v159, %v158
  %v163 = vpack.c.b16 %v161, %v160
  %166 = vst [vmem:[%s2] sm:$0xff] %v162
  %167 = vst [vmem:[%s2 + $0x8] sm:$0xff] %v163
  %v168 = vadd.f32 %v103, %v105
  %v169 = vadd.f32 %v168, %v144
  %v170 = vadd.f32 %v169, %v146
  %171 = vadd.xlane.f32.xlu0 %v170
  %v172 = vpop.xlane.xlu0 %171
  %vm173 = vcmask 7168
  %174 = vst.msk [vmem:[%s3] sm:$0xff] %vm173, %v172
  %v175 = vmul.f32 %v103, %v103
  %v176 = vmul.f32 %v105, %v105
  %v177 = vmul.f32 %v144, %v144
  %v178 = vmul.f32 %v146, %v146
  %v179 = vadd.f32 %v175, %v176
  %v180 = vadd.f32 %v179, %v177
  %v181 = vadd.f32 %v180, %v178
  %182 = vadd.xlane.f32.xlu0 %v181
  %v183 = vpop.xlane.xlu0 %182
  %184 = vst.msk [vmem:[%s4] sm:$0xff] %vm173, %v183
  // Predicated region
  $region10: #{featurenet_forward.15} parent=0 // pred_check
    _
  $region11: #{featurenet_forward.15} parent=0 // pred_check_branch
    %186 = sbr.rel (0) target = $region13
  $region12: #{featurenet_forward.15} parent=0 // pred_region
    _
  $region13: #{featurenet_forward.15} parent=0 // pred_fallthru
    _
  // Predicated region
  $region14: #{featurenet_forward.15} parent=0 // pred_check
    _
  $region15: #{featurenet_forward.15} parent=0 // pred_check_branch
    %188 = sbr.rel (0) target = $region17
  $region16: #{featurenet_forward.15} parent=0 // pred_region
    _
  $region17: #{featurenet_forward.15} parent=0 // pred_fallthru
    _
  // Predicated region
  $region18: #{featurenet_forward.15} parent=0 // pred_check
    _
  $region19: #{featurenet_forward.15} parent=0 // pred_check_branch
    %190 = sbr.rel (0) target = $region21
  $region20: #{featurenet_forward.15} parent=0 // pred_region
    _
  $region21: #{featurenet_forward.15} parent=0 // pred_fallthru
    _
  // Predicated region
  $region22: #{featurenet_forward.15} parent=0 // pred_check
    _
  $region23: #{featurenet_forward.15} parent=0 // pred_check_branch
    %192 = sbr.rel (0) target = $region25
  $region24: #{featurenet_forward.15} parent=0 // pred_region
    _
  $region25: #{featurenet_forward.15} parent=0 // pred_fallthru
    _
  // Predicated region
  $region26: #{featurenet_forward.15} parent=0 // pred_check
    _
  $region27: #{featurenet_forward.15} parent=0 // pred_check_branch
    %194 = sbr.rel (0) target = $region29
  $region28: #{featurenet_forward.15} parent=0 // pred_region
    _
  $region29: #{featurenet_forward.15} parent=0 // pred_fallthru
    _
  // Predicated region
  $region30: #{featurenet_forward.15} parent=0 // pred_check
    _
  $region31: #{featurenet_forward.15} parent=0 // pred_check_branch
    %196 = sbr.rel (0) target = $region33
  $region32: #{featurenet_forward.15} parent=0 // pred_region
    _
  $region33: #{featurenet_forward.15} parent=0 // pred_fallthru
    _

// kernel: featurenet_forward.16
$region0: #{featurenet_forward.16}
  #allocation0 [shape = 'u32[]', space=smem, size = 0x4, offset = 0x4, fixed_abs, tag = 'smem constant byte address 0x4 - core index']
  #allocation1 [shape = 'u32[144,128]{1,0:T(1,128)}', space=vmem, size = 0x12000, scoped, tag = 'internal scratch']
  %s0 = inlined_call_operand.vmem [shape: f32[8,1], index: 0, kind: input, shape index: {}]
  %s1 = inlined_call_operand.vmem [shape: f32[8,1], index: 1, kind: input, shape index: {}]
  %s2 = inlined_call_operand.vmem [shape: bf16[8,512], index: 2, kind: input, shape index: {}]
  %s3 = inlined_call_operand.vmem [shape: bf16[8,512], index: 3, kind: output, shape index: {}]
  %s4 = sld [smem:[#allocation0]]
  $region22: #{featurenet_forward.16} parent=0
    _
  %s6 = ssub.s32 1, %s4
  %s7 = scalar_select 0, %s6, %s4
  // Predicated region
  $region2: #{featurenet_forward.16} parent=0 // pred_check
    _
  $region3: #{featurenet_forward.16} parent=0 // pred_check_branch
    %9 = sbr.rel (0) target = $region5
  $region4: #{featurenet_forward.16} parent=0 // pred_region
    _
  $region5: #{featurenet_forward.16} parent=0 // pred_fallthru
    _
  // Predicated region
  $region6: #{featurenet_forward.16} parent=0 // pred_check
    _
  $region7: #{featurenet_forward.16} parent=0 // pred_check_branch
    %11 = sbr.rel (0) target = $region9
  $region8: #{featurenet_forward.16} parent=0 // pred_region
    _
  $region9: #{featurenet_forward.16} parent=0 // pred_fallthru
    _
  // Predicated region
  $region10: #{featurenet_forward.16} parent=0 // pred_check
    _
  $region11: #{featurenet_forward.16} parent=0 // pred_check_branch
    %13 = sbr.rel (0) target = $region13
  $region12: #{featurenet_forward.16} parent=0 // pred_region
    _
  $region13: #{featurenet_forward.16} parent=0 // pred_fallthru
    _
  %v14 = vld [vmem:[%s2] sm:$0xff]
  %v15 = vld [vmem:[%s2 + $0x8] sm:$0xff]
  %v16 = vunpack.c.l.bf16 %v14
  %v17 = vunpack.c.h.bf16 %v14
  %v18 = vunpack.c.l.bf16 %v15
  %v19 = vunpack.c.h.bf16 %v15
  %v20 = vld [vmem:[%s0] sm:$0xff]
  %22 = vset.pattern.permute.xlu0 0
  %23 = vperm.xlu0 %22, %v20
  %v24 = vpop.permute.xlu0 %23
  %v26 = vmul.f32 %v16, %v24
  %v27 = vmul.f32 %v17, %v24
  %v28 = vmul.f32 %v18, %v24
  %v29 = vmul.f32 %v19, %v24
  %v30 = vld [vmem:[%s1] sm:$0xff]
  %32 = vset.pattern.permute.xlu0 0
  %33 = vperm.xlu0 %32, %v30
  %v34 = vpop.permute.xlu0 %33
  %v36 = vadd.f32 %v26, %v34
  %v37 = vadd.f32 %v27, %v34
  %v38 = vadd.f32 %v28, %v34
  %v39 = vadd.f32 %v29, %v34
  %v40 = vmax.f32 %v36, 0.0
  %v41 = vmax.f32 %v37, 0.0
  %v42 = vmax.f32 %v38, 0.0
  %v43 = vmax.f32 %v39, 0.0
  %v44 = vpack.c.bf16 %v40, %v40
  %v45 = vpack.c.bf16 %v41, %v41
  %v46 = vpack.c.bf16 %v42, %v42
  %v47 = vpack.c.bf16 %v43, %v43
  %v52 = vunpack.c.l.b16 %v44
  %v53 = vunpack.c.l.b16 %v45
  %v54 = vunpack.c.l.b16 %v46
  %v55 = vunpack.c.l.b16 %v47
  %v56 = vpack.c.b16 %v53, %v52
  %v57 = vpack.c.b16 %v55, %v54
  %60 = vst [vmem:[%s3] sm:$0xff] %v56
  %61 = vst [vmem:[%s3 + $0x8] sm:$0xff] %v57
  // Predicated region
  $region14: #{featurenet_forward.16} parent=0 // pred_check
    _
  $region15: #{featurenet_forward.16} parent=0 // pred_check_branch
    %63 = sbr.rel (0) target = $region17
  $region16: #{featurenet_forward.16} parent=0 // pred_region
    _
  $region17: #{featurenet_forward.16} parent=0 // pred_fallthru
    _
  // Predicated region
  $region18: #{featurenet_forward.16} parent=0 // pred_check
    _
  $region19: #{featurenet_forward.16} parent=0 // pred_check_branch
    %65 = sbr.rel (0) target = $region21
  $region20: #{featurenet_forward.16} parent=0 // pred_region
    _
  $region21: #{featurenet_forward.16} parent=0 // pred_fallthru
    _

// kernel: featurenet_forward.17
$region0: #{featurenet_forward.17}
  #allocation0 [shape = 'u32[]', space=smem, size = 0x4, offset = 0x4, fixed_abs, tag = 'smem constant byte address 0x4 - core index']
  #allocation1 [shape = 'u32[144,128]{1,0:T(1,128)}', space=vmem, size = 0x12000, scoped, tag = 'internal scratch']
  %s0 = inlined_call_operand.vmem [shape: bf16[8,80], index: 0, kind: input, shape index: {}]
  %s1 = inlined_call_operand.vmem [shape: bf16[80,512], index: 1, kind: input, shape index: {}]
  %s2 = inlined_call_operand.vmem [shape: bf16[8,512], index: 2, kind: output, shape index: {0}]
  %s3 = inlined_call_operand.vmem [shape: f32[1,8,1], index: 3, kind: output, shape index: {1}]
  %s4 = inlined_call_operand.vmem [shape: f32[1,8,1], index: 4, kind: output, shape index: {2}]
  %5 = xla_tuple %s2, %s3, %s4
  %s6 = sld [smem:[#allocation0]]
  $region34: #{featurenet_forward.17} parent=0
    _
  %s8 = ssub.s32 1, %s6
  %s9 = scalar_select 0, %s8, %s6
  // Predicated region
  $region2: #{featurenet_forward.17} parent=0 // pred_check
    _
  $region3: #{featurenet_forward.17} parent=0 // pred_check_branch
    %11 = sbr.rel (0) target = $region5
  $region4: #{featurenet_forward.17} parent=0 // pred_region
    _
  $region5: #{featurenet_forward.17} parent=0 // pred_fallthru
    _
  // Predicated region
  $region6: #{featurenet_forward.17} parent=0 // pred_check
    _
  $region7: #{featurenet_forward.17} parent=0 // pred_check_branch
    %13 = sbr.rel (0) target = $region9
  $region8: #{featurenet_forward.17} parent=0 // pred_region
    _
  $region9: #{featurenet_forward.17} parent=0 // pred_fallthru
    _
  %v15 = vld [vmem:[%s0] sm:$0xf]
  %v16 = vld [vmem:[%s1] sm:$0xff]
  %v17 = vld [vmem:[%s1 + $0x8] sm:$0xff]
  %v18 = vld [vmem:[%s1 + $0x10] sm:$0xff]
  %v19 = vld [vmem:[%s1 + $0x18] sm:$0xff]
  %v20 = vld [vmem:[%s1 + $0x20] sm:$0xff]
  %v21 = vld [vmem:[%s1 + $0x28] sm:$0xff]
  %v22 = vld [vmem:[%s1 + $0x30] sm:$0xff]
  %v23 = vld [vmem:[%s1 + $0x38] sm:$0xff]
  %v24 = vld [vmem:[%s1 + $0x40] sm:$0xff]
  %v25 = vld [vmem:[%s1 + $0x48] sm:$0xff]
  %v26 = vld [vmem:[%s1 + $0x50] sm:$0xff]
  %v27 = vld [vmem:[%s1 + $0x58] sm:$0xff]
  %v28 = vld [vmem:[%s1 + $0x60] sm:$0xff]
  %v29 = vld [vmem:[%s1 + $0x68] sm:$0xff]
  %v30 = vld [vmem:[%s1 + $0x70] sm:$0xff]
  %v31 = vld [vmem:[%s1 + $0x78] sm:$0xff]
  %v32 = vld [vmem:[%s1 + $0x80] sm:$0xff]
  %v33 = vld [vmem:[%s1 + $0x88] sm:$0xff]
  %v34 = vld [vmem:[%s1 + $0x90] sm:$0xff]
  %v35 = vld [vmem:[%s1 + $0x98] sm:$0xff]
  %v56 = vunpack.c.l.b16 %v16
  %v57 = vunpack.c.h.b16 %v16
  %v58 = vunpack.c.l.b16 %v17
  %v59 = vunpack.c.h.b16 %v17
  %v60 = vunpack.c.l.b16 %v18
  %v61 = vunpack.c.h.b16 %v18
  %v62 = vunpack.c.l.b16 %v19
  %v63 = vunpack.c.h.b16 %v19
  %v64 = vunpack.c.l.b16 %v20
  %v65 = vunpack.c.h.b16 %v20
  %v66 = vunpack.c.l.b16 %v21
  %v67 = vunpack.c.h.b16 %v21
  %v68 = vunpack.c.l.b16 %v22
  %v69 = vunpack.c.h.b16 %v22
  %v70 = vunpack.c.l.b16 %v23
  %v71 = vunpack.c.h.b16 %v23
  %v72 = vunpack.c.l.b16 %v24
  %v73 = vunpack.c.h.b16 %v24
  %v74 = vunpack.c.l.b16 %v25
  %v75 = vunpack.c.h.b16 %v25
  %v76 = vunpack.c.l.b16 %v26
  %v77 = vunpack.c.h.b16 %v26
  %v78 = vunpack.c.l.b16 %v27
  %v79 = vunpack.c.h.b16 %v27
  %v80 = vunpack.c.l.b16 %v28
  %v81 = vunpack.c.h.b16 %v28
  %v82 = vunpack.c.l.b16 %v29
  %v83 = vunpack.c.h.b16 %v29
  %v84 = vunpack.c.l.b16 %v30
  %v85 = vunpack.c.h.b16 %v30
  %v86 = vunpack.c.l.b16 %v31
  %v87 = vunpack.c.h.b16 %v31
  %v88 = vunpack.c.l.b16 %v32
  %v89 = vunpack.c.h.b16 %v32
  %v90 = vunpack.c.l.b16 %v33
  %v91 = vunpack.c.h.b16 %v33
  %v92 = vunpack.c.l.b16 %v34
  %v93 = vunpack.c.h.b16 %v34
  %v94 = vunpack.c.l.b16 %v35
  %v95 = vunpack.c.h.b16 %v35
  %v96 = vpack.c.b16 %v60, %v56
  %v97 = vpack.c.b16 %v61, %v57
  %v98 = vpack.c.b16 %v62, %v58
  %v99 = vpack.c.b16 %v63, %v59
  %v100 = vpack.c.b16 %v68, %v64
  %v101 = vpack.c.b16 %v69, %v65
  %v102 = vpack.c.b16 %v70, %v66
  %v103 = vpack.c.b16 %v71, %v67
  %v104 = vpack.c.b16 %v76, %v72
  %v105 = vpack.c.b16 %v77, %v73
  %v106 = vpack.c.b16 %v78, %v74
  %v107 = vpack.c.b16 %v79, %v75
  %v108 = vpack.c.b16 %v84, %v80
  %v109 = vpack.c.b16 %v85, %v81
  %v110 = vpack.c.b16 %v86, %v82
  %v111 = vpack.c.b16 %v87, %v83
  %v112 = vpack.c.b16 %v92, %v88
  %v113 = vpack.c.b16 %v93, %v89
  %v114 = vpack.c.b16 %v94, %v90
  %v115 = vpack.c.b16 %v95, %v91
  %vm136 = vcmask 654336
  %v138 = vsel %vm136, %v15, 0
  %140 = vmatprep.subr.bf16.mxu0 0
  %141 = vmatpush1.bf16.msra.mxu0 0
  %142 = vmatprep.subr.bf16.mxu0 0
  %143 = vmatpush1.bf16.msra.mxu0 0
  %144 = vmatprep.subr.bf16.mxu0 0
  %145 = vmatpush1.bf16.msra.mxu0 0
  %146 = vmatprep.subr.bf16.mxu0 %v113
  %147 = vmatpush1.bf16.msra.mxu0 %v112
  %148 = vmatprep.subr.bf16.mxu0 %v109
  %149 = vmatpush1.bf16.msra.mxu0 %v108
  %150 = vmatprep.subr.bf16.mxu0 %v105
  %151 = vmatpush1.bf16.msra.mxu0 %v104
  %152 = vmatprep.subr.bf16.mxu0 %v101
  %153 = vmatpush1.bf16.msra.mxu0 %v100
  %154 = vmatprep.subr.bf16.mxu0 %v97
  %155 = vmatpush1.bf16.msra.mxu0 %v96
  %156 = vmatprep.subr.bf16.mxu0 0
  %157 = vmatpush2.bf16.msra.mxu0 0
  %158 = vmatprep.subr.bf16.mxu0 0
  %159 = vmatpush2.bf16.msra.mxu0 0
  %160 = vmatprep.subr.bf16.mxu0 0
  %161 = vmatpush2.bf16.msra.mxu0 0
  %162 = vmatprep.subr.bf16.mxu0 0
  %163 = vmatpush2.bf16.msra.mxu0 0
  %164 = vmatprep.subr.bf16.mxu0 0
  %165 = vmatpush2.bf16.msra.mxu0 0
  %166 = vmatprep.subr.bf16.mxu0 0
  %167 = vmatpush2.bf16.msra.mxu0 0
  %168 = vmatprep.subr.bf16.mxu0 0
  %169 = vmatpush2.bf16.msra.mxu0 0
  %170 = vmatprep.subr.bf16.mxu0 0
  %171 = vmatpush2.bf16.msra.mxu0 0
  %172 = vmatprep.mubr.bf16.mxu0 0
  %173 = vmatmul.mubr.bf16.gmra.mxu0 %v138
  %v174 = vpop.f32.mrf.mxu0
  %v175 = vadd.f32 0.0, %v174
  %v176 = vpop.f32.mrf.mxu0
  %v177 = vadd.f32 0.0, %v176
  %v178 = vpop.f32.mrf.mxu0
  %v179 = vpop.f32.mrf.mxu0
  %180 = vdwg.mxu0
  %181 = vmatprep.subr.bf16.mxu0 0
  %182 = vmatpush1.bf16.msra.mxu0 0
  %183 = vmatprep.subr.bf16.mxu0 0
  %184 = vmatpush1.bf16.msra.mxu0 0
  %185 = vmatprep.subr.bf16.mxu0 0
  %186 = vmatpush1.bf16.msra.mxu0 0
  %187 = vmatprep.subr.bf16.mxu0 %v115
  %188 = vmatpush1.bf16.msra.mxu0 %v114
  %189 = vmatprep.subr.bf16.mxu0 %v111
  %190 = vmatpush1.bf16.msra.mxu0 %v110
  %191 = vmatprep.subr.bf16.mxu0 %v107
  %192 = vmatpush1.bf16.msra.mxu0 %v106
  %193 = vmatprep.subr.bf16.mxu0 %v103
  %194 = vmatpush1.bf16.msra.mxu0 %v102
  %195 = vmatprep.subr.bf16.mxu0 %v99
  %196 = vmatpush1.bf16.msra.mxu0 %v98
  %197 = vmatprep.subr.bf16.mxu0 0
  %198 = vmatpush2.bf16.msra.mxu0 0
  %199 = vmatprep.subr.bf16.mxu0 0
  %200 = vmatpush2.bf16.msra.mxu0 0
  %201 = vmatprep.subr.bf16.mxu0 0
  %202 = vmatpush2.bf16.msra.mxu0 0
  %203 = vmatprep.subr.bf16.mxu0 0
  %204 = vmatpush2.bf16.msra.mxu0 0
  %205 = vmatprep.subr.bf16.mxu0 0
  %206 = vmatpush2.bf16.msra.mxu0 0
  %207 = vmatprep.subr.bf16.mxu0 0
  %208 = vmatpush2.bf16.msra.mxu0 0
  %209 = vmatprep.subr.bf16.mxu0 0
  %210 = vmatpush2.bf16.msra.mxu0 0
  %211 = vmatprep.subr.bf16.mxu0 0
  %212 = vmatpush2.bf16.msra.mxu0 0
  %213 = vmatprep.mubr.bf16.mxu0 0
  %214 = vmatmul.mubr.bf16.gmra.mxu0 %v138
  %v215 = vpop.f32.mrf.mxu0
  %v216 = vadd.f32 0.0, %v215
  %v217 = vpop.f32.mrf.mxu0
  %v218 = vadd.f32 0.0, %v217
  %v219 = vpop.f32.mrf.mxu0
  %v220 = vpop.f32.mrf.mxu0
  %221 = vdwg.mxu0
  %v222 = vpack.c.bf16 %v175, %v175
  %v223 = vpack.c.bf16 %v177, %v177
  %v224 = vpack.c.bf16 %v216, %v216
  %v225 = vpack.c.bf16 %v218, %v218
  %v230 = vunpack.c.l.b16 %v222
  %v231 = vunpack.c.l.b16 %v223
  %v232 = vunpack.c.l.b16 %v224
  %v233 = vunpack.c.l.b16 %v225
  %v234 = vpack.c.b16 %v231, %v230
  %v235 = vpack.c.b16 %v233, %v232
  %238 = vst [vmem:[%s2] sm:$0xff] %v234
  %239 = vst [vmem:[%s2 + $0x8] sm:$0xff] %v235
  %v240 = vadd.f32 %v175, %v177
  %v241 = vadd.f32 %v240, %v216
  %v242 = vadd.f32 %v241, %v218
  %243 = vadd.xlane.f32.xlu0 %v242
  %v244 = vpop.xlane.xlu0 %243
  %vm245 = vcmask 7168
  %246 = vst.msk [vmem:[%s3] sm:$0xff] %vm245, %v244
  %v247 = vmul.f32 %v175, %v175
  %v248 = vmul.f32 %v177, %v177
  %v249 = vmul.f32 %v216, %v216
  %v250 = vmul.f32 %v218, %v218
  %v251 = vadd.f32 %v247, %v248
  %v252 = vadd.f32 %v251, %v249
  %v253 = vadd.f32 %v252, %v250
  %254 = vadd.xlane.f32.xlu0 %v253
  %v255 = vpop.xlane.xlu0 %254
  %256 = vst.msk [vmem:[%s4] sm:$0xff] %vm245, %v255
  // Predicated region
  $region10: #{featurenet_forward.17} parent=0 // pred_check
    _
  $region11: #{featurenet_forward.17} parent=0 // pred_check_branch
    %258 = sbr.rel (0) target = $region13
  $region12: #{featurenet_forward.17} parent=0 // pred_region
    _
  $region13: #{featurenet_forward.17} parent=0 // pred_fallthru
    _
  // Predicated region
  $region14: #{featurenet_forward.17} parent=0 // pred_check
    _
  $region15: #{featurenet_forward.17} parent=0 // pred_check_branch
    %260 = sbr.rel (0) target = $region17
  $region16: #{featurenet_forward.17} parent=0 // pred_region
    _
  $region17: #{featurenet_forward.17} parent=0 // pred_fallthru
    _
  // Predicated region
  $region18: #{featurenet_forward.17} parent=0 // pred_check
    _
  $region19: #{featurenet_forward.17} parent=0 // pred_check_branch
    %262 = sbr.rel (0) target = $region21
  $region20: #{featurenet_forward.17} parent=0 // pred_region
    _
  $region21: #{featurenet_forward.17} parent=0 // pred_fallthru
    _
  // Predicated region
  $region22: #{featurenet_forward.17} parent=0 // pred_check
    _
  $region23: #{featurenet_forward.17} parent=0 // pred_check_branch
    %264 = sbr.rel (0) target = $region25
  $region24: #{featurenet_forward.17} parent=0 // pred_region
    _
  $region25: #{featurenet_forward.17} parent=0 // pred_fallthru
    _
  // Predicated region
  $region26: #{featurenet_forward.17} parent=0 // pred_check
    _
  $region27: #{featurenet_forward.17} parent=0 // pred_check_branch
    %266 = sbr.rel (0) target = $region29
  $region28: #{featurenet_forward.17} parent=0 // pred_region
    _
  $region29: #{featurenet_forward.17} parent=0 // pred_fallthru
    _
  // Predicated region
  $region30: #{featurenet_forward.17} parent=0 // pred_check
    _
  $region31: #{featurenet_forward.17} parent=0 // pred_check_branch
    %268 = sbr.rel (0) target = $region33
  $region32: #{featurenet_forward.17} parent=0 // pred_region
    _
  $region33: #{featurenet_forward.17} parent=0 // pred_fallthru
    _

// kernel: featurenet_forward.20
$region0: #{featurenet_forward.20}
  #allocation0 [shape = 'u32[]', space=smem, size = 0x4, offset = 0x4, fixed_abs, tag = 'smem constant byte address 0x4 - core index']
  #allocation1 [shape = 'u32[144,128]{1,0:T(1,128)}', space=vmem, size = 0x12000, scoped, tag = 'internal scratch']
  %s0 = inlined_call_operand.vmem [shape: f32[16,1], index: 0, kind: input, shape index: {}]
  %s1 = inlined_call_operand.vmem [shape: f32[16,1], index: 1, kind: input, shape index: {}]
  %s2 = inlined_call_operand.vmem [shape: bf16[16,128], index: 2, kind: input, shape index: {}]
  %s3 = inlined_call_operand.vmem [shape: bf16[16,128], index: 3, kind: output, shape index: {}]
  %s4 = sld [smem:[#allocation0]]
  $region22: #{featurenet_forward.20} parent=0
    _
  %s6 = ssub.s32 1, %s4
  %s7 = scalar_select 0, %s6, %s4
  // Predicated region
  $region2: #{featurenet_forward.20} parent=0 // pred_check
    _
  $region3: #{featurenet_forward.20} parent=0 // pred_check_branch
    %9 = sbr.rel (0) target = $region5
  $region4: #{featurenet_forward.20} parent=0 // pred_region
    _
  $region5: #{featurenet_forward.20} parent=0 // pred_fallthru
    _
  // Predicated region
  $region6: #{featurenet_forward.20} parent=0 // pred_check
    _
  $region7: #{featurenet_forward.20} parent=0 // pred_check_branch
    %11 = sbr.rel (0) target = $region9
  $region8: #{featurenet_forward.20} parent=0 // pred_region
    _
  $region9: #{featurenet_forward.20} parent=0 // pred_fallthru
    _
  // Predicated region
  $region10: #{featurenet_forward.20} parent=0 // pred_check
    _
  $region11: #{featurenet_forward.20} parent=0 // pred_check_branch
    %13 = sbr.rel (0) target = $region13
  $region12: #{featurenet_forward.20} parent=0 // pred_region
    _
  $region13: #{featurenet_forward.20} parent=0 // pred_fallthru
    _
  %v14 = vld [vmem:[%s2] sm:$0xf]
  %v15 = vld [vmem:[%s2 + $0x4] sm:$0xf]
  %v16 = vunpack.c.l.bf16 %v14
  %v17 = vunpack.c.l.bf16 %v15
  %v18 = vld [vmem:[%s0] sm:$0xff]
  %v19 = vld [vmem:[%s0 + $0x8] sm:$0xff]
  %21 = vset.pattern.permute.xlu0 0
  %22 = vperm.xlu0 %21, %v18
  %v23 = vpop.permute.xlu0 %22
  %26 = vset.pattern.permute.xlu0 0
  %27 = vperm.xlu0 %26, %v19
  %v28 = vpop.permute.xlu0 %27
  %v30 = vmul.f32 %v16, %v23
  %v31 = vmul.f32 %v17, %v28
  %v32 = vld [vmem:[%s1] sm:$0xff]
  %v33 = vld [vmem:[%s1 + $0x8] sm:$0xff]
  %35 = vset.pattern.permute.xlu0 0
  %36 = vperm.xlu0 %35, %v32
  %v37 = vpop.permute.xlu0 %36
  %40 = vset.pattern.permute.xlu0 0
  %41 = vperm.xlu0 %40, %v33
  %v42 = vpop.permute.xlu0 %41
  %v44 = vadd.f32 %v30, %v37
  %v45 = vadd.f32 %v31, %v42
  %v46 = vmax.f32 %v44, 0.0
  %v47 = vmax.f32 %v45, 0.0
  %v48 = vpack.c.bf16 %v47, %v46
  %v50 = vunpack.c.l.b16 %v48
  %v51 = vunpack.c.h.b16 %v48
  %v52 = vpack.c.b16 %v50, %v50
  %v53 = vpack.c.b16 %v51, %v51
  %56 = vst [vmem:[%s3] sm:$0xf] %v52
  %57 = vst [vmem:[%s3 + $0x4] sm:$0xf] %v53
  // Predicated region
  $region14: #{featurenet_forward.20} parent=0 // pred_check
    _
  $region15: #{featurenet_forward.20} parent=0 // pred_check_branch
    %59 = sbr.rel (0) target = $region17
  $region16: #{featurenet_forward.20} parent=0 // pred_region
    _
  $region17: #{featurenet_forward.20} parent=0 // pred_fallthru
    _
  // Predicated region
  $region18: #{featurenet_forward.20} parent=0 // pred_check
    _
  $region19: #{featurenet_forward.20} parent=0 // pred_check_branch
    %61 = sbr.rel (0) target = $region21
  $region20: #{featurenet_forward.20} parent=0 // pred_region
    _
  $region21: #{featurenet_forward.20} parent=0 // pred_fallthru
    _

// kernel: featurenet_forward.19
$region0: #{featurenet_forward.19}
  #allocation0 [shape = 'u32[]', space=smem, size = 0x4, offset = 0x4, fixed_abs, tag = 'smem constant byte address 0x4 - core index']
  #allocation1 [shape = 'u32[144,128]{1,0:T(1,128)}', space=vmem, size = 0x12000, scoped, tag = 'internal scratch']
  %s0 = inlined_call_operand.vmem [shape: bf16[16,208], index: 0, kind: input, shape index: {}]
  %s1 = inlined_call_operand.vmem [shape: bf16[208,128], index: 1, kind: input, shape index: {}]
  %s2 = inlined_call_operand.vmem [shape: bf16[16,128], index: 2, kind: output, shape index: {0}]
  %s3 = inlined_call_operand.vmem [shape: f32[1,16,1], index: 3, kind: output, shape index: {1}]
  %s4 = inlined_call_operand.vmem [shape: f32[1,16,1], index: 4, kind: output, shape index: {2}]
  %5 = xla_tuple %s2, %s3, %s4
  %s6 = sld [smem:[#allocation0]]
  $region34: #{featurenet_forward.19} parent=0
    _
  %s8 = ssub.s32 1, %s6
  %s9 = scalar_select 0, %s8, %s6
  // Predicated region
  $region2: #{featurenet_forward.19} parent=0 // pred_check
    _
  $region3: #{featurenet_forward.19} parent=0 // pred_check_branch
    %11 = sbr.rel (0) target = $region5
  $region4: #{featurenet_forward.19} parent=0 // pred_region
    _
  $region5: #{featurenet_forward.19} parent=0 // pred_fallthru
    _
  // Predicated region
  $region6: #{featurenet_forward.19} parent=0 // pred_check
    _
  $region7: #{featurenet_forward.19} parent=0 // pred_check_branch
    %13 = sbr.rel (0) target = $region9
  $region8: #{featurenet_forward.19} parent=0 // pred_region
    _
  $region9: #{featurenet_forward.19} parent=0 // pred_fallthru
    _
  %v15 = vld [vmem:[%s0] sm:$0xff]
  %v16 = vld [vmem:[%s0 + $0x8] sm:$0xff]
  %v17 = vld [vmem:[%s1] sm:$0xf]
  %v18 = vld [vmem:[%s1 + $0x4] sm:$0xf]
  %v19 = vld [vmem:[%s1 + $0x8] sm:$0xf]
  %v20 = vld [vmem:[%s1 + $0xc] sm:$0xf]
  %v21 = vld [vmem:[%s1 + $0x10] sm:$0xf]
  %v22 = vld [vmem:[%s1 + $0x14] sm:$0xf]
  %v23 = vld [vmem:[%s1 + $0x18] sm:$0xf]
  %v24 = vld [vmem:[%s1 + $0x1c] sm:$0xf]
  %v25 = vld [vmem:[%s1 + $0x20] sm:$0xf]
  %v26 = vld [vmem:[%s1 + $0x24] sm:$0xf]
  %v27 = vld [vmem:[%s1 + $0x28] sm:$0xf]
  %v28 = vld [vmem:[%s1 + $0x2c] sm:$0xf]
  %v29 = vld [vmem:[%s1 + $0x30] sm:$0xf]
  %v30 = vld [vmem:[%s1 + $0x34] sm:$0xf]
  %v31 = vld [vmem:[%s1 + $0x38] sm:$0xf]
  %v32 = vld [vmem:[%s1 + $0x3c] sm:$0xf]
  %v33 = vld [vmem:[%s1 + $0x40] sm:$0xf]
  %v34 = vld [vmem:[%s1 + $0x44] sm:$0xf]
  %v35 = vld [vmem:[%s1 + $0x48] sm:$0xf]
  %v36 = vld [vmem:[%s1 + $0x4c] sm:$0xf]
  %v37 = vld [vmem:[%s1 + $0x50] sm:$0xf]
  %v38 = vld [vmem:[%s1 + $0x54] sm:$0xf]
  %v39 = vld [vmem:[%s1 + $0x58] sm:$0xf]
  %v40 = vld [vmem:[%s1 + $0x5c] sm:$0xf]
  %v41 = vld [vmem:[%s1 + $0x60] sm:$0xf]
  %v42 = vld [vmem:[%s1 + $0x64] sm:$0xf]
  %v45 = vunpack.c.l.b16 %v15
  %v46 = vunpack.c.h.b16 %v15
  %v47 = vunpack.c.l.b16 %v16
  %v48 = vunpack.c.h.b16 %v16
  %v49 = vpack.c.b16 %v47, %v45
  %v50 = vpack.c.b16 %v48, %v46
  %v78 = vunpack.c.l.b16 %v17
  %v79 = vunpack.c.l.b16 %v18
  %v80 = vunpack.c.l.b16 %v19
  %v81 = vunpack.c.l.b16 %v20
  %v82 = vunpack.c.l.b16 %v21
  %v83 = vunpack.c.l.b16 %v22
  %v84 = vunpack.c.l.b16 %v23
  %v85 = vunpack.c.l.b16 %v24
  %v86 = vunpack.c.l.b16 %v25
  %v87 = vunpack.c.l.b16 %v26
  %v88 = vunpack.c.l.b16 %v27
  %v89 = vunpack.c.l.b16 %v28
  %v90 = vunpack.c.l.b16 %v29
  %v91 = vunpack.c.l.b16 %v30
  %v92 = vunpack.c.l.b16 %v31
  %v93 = vunpack.c.l.b16 %v32
  %v94 = vunpack.c.l.b16 %v33
  %v95 = vunpack.c.l.b16 %v34
  %v96 = vunpack.c.l.b16 %v35
  %v97 = vunpack.c.l.b16 %v36
  %v98 = vunpack.c.l.b16 %v37
  %v99 = vunpack.c.l.b16 %v38
  %v100 = vunpack.c.l.b16 %v39
  %v101 = vunpack.c.l.b16 %v40
  %v102 = vunpack.c.l.b16 %v41
  %v103 = vunpack.c.l.b16 %v42
  %v104 = vpack.c.b16 %v79, %v78
  %v105 = vpack.c.b16 %v81, %v80
  %v106 = vpack.c.b16 %v83, %v82
  %v107 = vpack.c.b16 %v85, %v84
  %v108 = vpack.c.b16 %v87, %v86
  %v109 = vpack.c.b16 %v89, %v88
  %v110 = vpack.c.b16 %v91, %v90
  %v111 = vpack.c.b16 %v93, %v92
  %v112 = vpack.c.b16 %v95, %v94
  %v113 = vpack.c.b16 %v97, %v96
  %v114 = vpack.c.b16 %v99, %v98
  %v115 = vpack.c.b16 %v101, %v100
  %v116 = vpack.c.b16 %v103, %v102
  %vm130 = vcmask 654336
  %v132 = vsel %vm130, %v50, 0
  %134 = vmatprep.subr.bf16.mxu0 0
  %135 = vmatpush1.bf16.msra.mxu0 %v111
  %136 = vmatprep.subr.bf16.mxu0 0
  %137 = vmatpush1.bf16.msra.mxu0 %v110
  %138 = vmatprep.subr.bf16.mxu0 0
  %139 = vmatpush1.bf16.msra.mxu0 %v109
  %140 = vmatprep.subr.bf16.mxu0 0
  %141 = vmatpush1.bf16.msra.mxu0 %v108
  %142 = vmatprep.subr.bf16.mxu0 0
  %143 = vmatpush1.bf16.msra.mxu0 %v107
  %144 = vmatprep.subr.bf16.mxu0 0
  %145 = vmatpush1.bf16.msra.mxu0 %v106
  %146 = vmatprep.subr.bf16.mxu0 0
  %147 = vmatpush1.bf16.msra.mxu0 %v105
  %148 = vmatprep.subr.bf16.mxu0 0
  %149 = vmatpush1.bf16.msra.mxu0 %v104
  %150 = vmatprep.subr.bf16.mxu0 0
  %151 = vmatpush2.bf16.msra.mxu0 0
  %152 = vmatprep.subr.bf16.mxu0 0
  %153 = vmatpush2.bf16.msra.mxu0 0
  %154 = vmatprep.subr.bf16.mxu0 0
  %155 = vmatpush2.bf16.msra.mxu0 0
  %156 = vmatprep.subr.bf16.mxu0 0
  %157 = vmatpush2.bf16.msra.mxu0 %v116
  %158 = vmatprep.subr.bf16.mxu0 0
  %159 = vmatpush2.bf16.msra.mxu0 %v115
  %160 = vmatprep.subr.bf16.mxu0 0
  %161 = vmatpush2.bf16.msra.mxu0 %v114
  %162 = vmatprep.subr.bf16.mxu0 0
  %163 = vmatpush2.bf16.msra.mxu0 %v113
  %164 = vmatprep.subr.bf16.mxu0 0
  %165 = vmatpush2.bf16.msra.mxu0 %v112
  %166 = vmatprep.mubr.bf16.mxu0 %v132
  %167 = vmatmul.mubr.bf16.gmra.mxu0 %v49
  %v168 = vpop.f32.mrf.mxu0
  %v169 = vadd.f32 0.0, %v168
  %v170 = vpop.f32.mrf.mxu0
  %v171 = vpop.f32.mrf.mxu0
  %v172 = vadd.f32 0.0, %v171
  %v173 = vpop.f32.mrf.mxu0
  %174 = vdwg.mxu0
  %v175 = vpack.c.bf16 %v172, %v169
  %v177 = vunpack.c.l.b16 %v175
  %v178 = vunpack.c.h.b16 %v175
  %v179 = vpack.c.b16 %v177, %v177
  %v180 = vpack.c.b16 %v178, %v178
  %183 = vst [vmem:[%s2] sm:$0xf] %v179
  %184 = vst [vmem:[%s2 + $0x4] sm:$0xf] %v180
  %185 = vadd.xlane.f32.xlu0 %v169
  %v186 = vpop.xlane.xlu0 %185
  %187 = vadd.xlane.f32.xlu0 %v172
  %v188 = vpop.xlane.xlu0 %187
  %vm189 = vcmask 7168
  %190 = vst.msk [vmem:[%s3] sm:$0xff] %vm189, %v186
  %191 = vst.msk [vmem:[%s3 + $0x8] sm:$0xff] %vm189, %v188
  %v192 = vmul.f32 %v169, %v169
  %v193 = vmul.f32 %v172, %v172
  %194 = vadd.xlane.f32.xlu0 %v192
  %v195 = vpop.xlane.xlu0 %194
  %196 = vadd.xlane.f32.xlu0 %v193
  %v197 = vpop.xlane.xlu0 %196
  %198 = vst.msk [vmem:[%s4] sm:$0xff] %vm189, %v195
  %199 = vst.msk [vmem:[%s4 + $0x8] sm:$0xff] %vm189, %v197
  // Predicated region
  $region10: #{featurenet_forward.19} parent=0 // pred_check
    _
  $region11: #{featurenet_forward.19} parent=0 // pred_check_branch
    %201 = sbr.rel (0) target = $region13
  $region12: #{featurenet_forward.19} parent=0 // pred_region
    _
  $region13: #{featurenet_forward.19} parent=0 // pred_fallthru
    _
  // Predicated region
  $region14: #{featurenet_forward.19} parent=0 // pred_check
    _
  $region15: #{featurenet_forward.19} parent=0 // pred_check_branch
    %203 = sbr.rel (0) target = $region17
  $region16: #{featurenet_forward.19} parent=0 // pred_region
    _
  $region17: #{featurenet_forward.19} parent=0 // pred_fallthru
    _
  // Predicated region
  $region18: #{featurenet_forward.19} parent=0 // pred_check
    _
  $region19: #{featurenet_forward.19} parent=0 // pred_check_branch
    %205 = sbr.rel (0) target = $region21
  $region20: #{featurenet_forward.19} parent=0 // pred_region
    _
  $region21: #{featurenet_forward.19} parent=0 // pred_fallthru
    _
  // Predicated region
  $region22: #{featurenet_forward.19} parent=0 // pred_check
    _
  $region23: #{featurenet_forward.19} parent=0 // pred_check_branch
    %207 = sbr.rel (0) target = $region25
  $region24: #{featurenet_forward.19} parent=0 // pred_region
    _
  $region25: #{featurenet_forward.19} parent=0 // pred_fallthru
    _
  // Predicated region
  $region26: #{featurenet_forward.19} parent=0 // pred_check
    _
  $region27: #{featurenet_forward.19} parent=0 // pred_check_branch
    %209 = sbr.rel (0) target = $region29
  $region28: #{featurenet_forward.19} parent=0 // pred_region
    _
  $region29: #{featurenet_forward.19} parent=0 // pred_fallthru
    _
  // Predicated region
  $region30: #{featurenet_forward.19} parent=0 // pred_check
    _
  $region31: #{featurenet_forward.19} parent=0 // pred_check_branch
    %211 = sbr.rel (0) target = $region33
  $region32: #{featurenet_forward.19} parent=0 // pred_region
    _
  $region33: #{featurenet_forward.19} parent=0 // pred_fallthru
    _

// kernel: featurenet_forward.21
$region0: #{featurenet_forward.21}
  #allocation0 [shape = 'u32[]', space=smem, size = 0x4, offset = 0x4, fixed_abs, tag = 'smem constant byte address 0x4 - core index']
  #allocation1 [shape = 'u32[144,128]{1,0:T(1,128)}', space=vmem, size = 0x12000, scoped, tag = 'internal scratch']
  %s0 = inlined_call_operand.vmem [shape: bf16[16,144], index: 0, kind: input, shape index: {}]
  %s1 = inlined_call_operand.vmem [shape: bf16[144,128], index: 1, kind: input, shape index: {}]
  %s2 = inlined_call_operand.vmem [shape: bf16[16,128], index: 2, kind: output, shape index: {0}]
  %s3 = inlined_call_operand.vmem [shape: f32[1,16,1], index: 3, kind: output, shape index: {1}]
  %s4 = inlined_call_operand.vmem [shape: f32[1,16,1], index: 4, kind: output, shape index: {2}]
  %5 = xla_tuple %s2, %s3, %s4
  %s6 = sld [smem:[#allocation0]]
  $region34: #{featurenet_forward.21} parent=0
    _
  %s8 = ssub.s32 1, %s6
  %s9 = scalar_select 0, %s8, %s6
  // Predicated region
  $region2: #{featurenet_forward.21} parent=0 // pred_check
    _
  $region3: #{featurenet_forward.21} parent=0 // pred_check_branch
    %11 = sbr.rel (0) target = $region5
  $region4: #{featurenet_forward.21} parent=0 // pred_region
    _
  $region5: #{featurenet_forward.21} parent=0 // pred_fallthru
    _
  // Predicated region
  $region6: #{featurenet_forward.21} parent=0 // pred_check
    _
  $region7: #{featurenet_forward.21} parent=0 // pred_check_branch
    %13 = sbr.rel (0) target = $region9
  $region8: #{featurenet_forward.21} parent=0 // pred_region
    _
  $region9: #{featurenet_forward.21} parent=0 // pred_fallthru
    _
  %v15 = vld [vmem:[%s0] sm:$0xff]
  %v16 = vld [vmem:[%s0 + $0x8] sm:$0xff]
  %v17 = vld [vmem:[%s1] sm:$0xf]
  %v18 = vld [vmem:[%s1 + $0x4] sm:$0xf]
  %v19 = vld [vmem:[%s1 + $0x8] sm:$0xf]
  %v20 = vld [vmem:[%s1 + $0xc] sm:$0xf]
  %v21 = vld [vmem:[%s1 + $0x10] sm:$0xf]
  %v22 = vld [vmem:[%s1 + $0x14] sm:$0xf]
  %v23 = vld [vmem:[%s1 + $0x18] sm:$0xf]
  %v24 = vld [vmem:[%s1 + $0x1c] sm:$0xf]
  %v25 = vld [vmem:[%s1 + $0x20] sm:$0xf]
  %v26 = vld [vmem:[%s1 + $0x24] sm:$0xf]
  %v27 = vld [vmem:[%s1 + $0x28] sm:$0xf]
  %v28 = vld [vmem:[%s1 + $0x2c] sm:$0xf]
  %v29 = vld [vmem:[%s1 + $0x30] sm:$0xf]
  %v30 = vld [vmem:[%s1 + $0x34] sm:$0xf]
  %v31 = vld [vmem:[%s1 + $0x38] sm:$0xf]
  %v32 = vld [vmem:[%s1 + $0x3c] sm:$0xf]
  %v33 = vld [vmem:[%s1 + $0x40] sm:$0xf]
  %v34 = vld [vmem:[%s1 + $0x44] sm:$0xf]
  %v37 = vunpack.c.l.b16 %v15
  %v38 = vunpack.c.h.b16 %v15
  %v39 = vunpack.c.l.b16 %v16
  %v40 = vunpack.c.h.b16 %v16
  %v41 = vpack.c.b16 %v39, %v37
  %v42 = vpack.c.b16 %v40, %v38
  %v62 = vunpack.c.l.b16 %v17
  %v63 = vunpack.c.l.b16 %v18
  %v64 = vunpack.c.l.b16 %v19
  %v65 = vunpack.c.l.b16 %v20
  %v66 = vunpack.c.l.b16 %v21
  %v67 = vunpack.c.l.b16 %v22
  %v68 = vunpack.c.l.b16 %v23
  %v69 = vunpack.c.l.b16 %v24
  %v70 = vunpack.c.l.b16 %v25
  %v71 = vunpack.c.l.b16 %v26
  %v72 = vunpack.c.l.b16 %v27
  %v73 = vunpack.c.l.b16 %v28
  %v74 = vunpack.c.l.b16 %v29
  %v75 = vunpack.c.l.b16 %v30
  %v76 = vunpack.c.l.b16 %v31
  %v77 = vunpack.c.l.b16 %v32
  %v78 = vunpack.c.l.b16 %v33
  %v79 = vunpack.c.l.b16 %v34
  %v80 = vpack.c.b16 %v63, %v62
  %v81 = vpack.c.b16 %v65, %v64
  %v82 = vpack.c.b16 %v67, %v66
  %v83 = vpack.c.b16 %v69, %v68
  %v84 = vpack.c.b16 %v71, %v70
  %v85 = vpack.c.b16 %v73, %v72
  %v86 = vpack.c.b16 %v75, %v74
  %v87 = vpack.c.b16 %v77, %v76
  %v88 = vpack.c.b16 %v79, %v78
  %vm98 = vcmask 130048
  %v100 = vsel %vm98, %v42, 0
  %102 = vmatprep.subr.bf16.mxu0 0
  %103 = vmatpush1.bf16.msra.mxu0 %v87
  %104 = vmatprep.subr.bf16.mxu0 0
  %105 = vmatpush1.bf16.msra.mxu0 %v86
  %106 = vmatprep.subr.bf16.mxu0 0
  %107 = vmatpush1.bf16.msra.mxu0 %v85
  %108 = vmatprep.subr.bf16.mxu0 0
  %109 = vmatpush1.bf16.msra.mxu0 %v84
  %110 = vmatprep.subr.bf16.mxu0 0
  %111 = vmatpush1.bf16.msra.mxu0 %v83
  %112 = vmatprep.subr.bf16.mxu0 0
  %113 = vmatpush1.bf16.msra.mxu0 %v82
  %114 = vmatprep.subr.bf16.mxu0 0
  %115 = vmatpush1.bf16.msra.mxu0 %v81
  %116 = vmatprep.subr.bf16.mxu0 0
  %117 = vmatpush1.bf16.msra.mxu0 %v80
  %118 = vmatprep.subr.bf16.mxu0 0
  %119 = vmatpush2.bf16.msra.mxu0 0
  %120 = vmatprep.subr.bf16.mxu0 0
  %121 = vmatpush2.bf16.msra.mxu0 0
  %122 = vmatprep.subr.bf16.mxu0 0
  %123 = vmatpush2.bf16.msra.mxu0 0
  %124 = vmatprep.subr.bf16.mxu0 0
  %125 = vmatpush2.bf16.msra.mxu0 0
  %126 = vmatprep.subr.bf16.mxu0 0
  %127 = vmatpush2.bf16.msra.mxu0 0
  %128 = vmatprep.subr.bf16.mxu0 0
  %129 = vmatpush2.bf16.msra.mxu0 0
  %130 = vmatprep.subr.bf16.mxu0 0
  %131 = vmatpush2.bf16.msra.mxu0 0
  %132 = vmatprep.subr.bf16.mxu0 0
  %133 = vmatpush2.bf16.msra.mxu0 %v88
  %134 = vmatprep.mubr.bf16.mxu0 %v100
  %135 = vmatmul.mubr.bf16.gmra.mxu0 %v41
  %v136 = vpop.f32.mrf.mxu0
  %v137 = vadd.f32 0.0, %v136
  %v138 = vpop.f32.mrf.mxu0
  %v139 = vpop.f32.mrf.mxu0
  %v140 = vadd.f32 0.0, %v139
  %v141 = vpop.f32.mrf.mxu0
  %142 = vdwg.mxu0
  %v143 = vpack.c.bf16 %v140, %v137
  %v145 = vunpack.c.l.b16 %v143
  %v146 = vunpack.c.h.b16 %v143
  %v147 = vpack.c.b16 %v145, %v145
  %v148 = vpack.c.b16 %v146, %v146
  %151 = vst [vmem:[%s2] sm:$0xf] %v147
  %152 = vst [vmem:[%s2 + $0x4] sm:$0xf] %v148
  %153 = vadd.xlane.f32.xlu0 %v137
  %v154 = vpop.xlane.xlu0 %153
  %155 = vadd.xlane.f32.xlu0 %v140
  %v156 = vpop.xlane.xlu0 %155
  %vm157 = vcmask 7168
  %158 = vst.msk [vmem:[%s3] sm:$0xff] %vm157, %v154
  %159 = vst.msk [vmem:[%s3 + $0x8] sm:$0xff] %vm157, %v156
  %v160 = vmul.f32 %v137, %v137
  %v161 = vmul.f32 %v140, %v140
  %162 = vadd.xlane.f32.xlu0 %v160
  %v163 = vpop.xlane.xlu0 %162
  %164 = vadd.xlane.f32.xlu0 %v161
  %v165 = vpop.xlane.xlu0 %164
  %166 = vst.msk [vmem:[%s4] sm:$0xff] %vm157, %v163
  %167 = vst.msk [vmem:[%s4 + $0x8] sm:$0xff] %vm157, %v165
  // Predicated region
  $region10: #{featurenet_forward.21} parent=0 // pred_check
    _
  $region11: #{featurenet_forward.21} parent=0 // pred_check_branch
    %169 = sbr.rel (0) target = $region13
  $region12: #{featurenet_forward.21} parent=0 // pred_region
    _
  $region13: #{featurenet_forward.21} parent=0 // pred_fallthru
    _
  // Predicated region
  $region14: #{featurenet_forward.21} parent=0 // pred_check
    _
  $region15: #{featurenet_forward.21} parent=0 // pred_check_branch
    %171 = sbr.rel (0) target = $region17
  $region16: #{featurenet_forward.21} parent=0 // pred_region
    _
  $region17: #{featurenet_forward.21} parent=0 // pred_fallthru
    _
  // Predicated region
  $region18: #{featurenet_forward.21} parent=0 // pred_check
    _
  $region19: #{featurenet_forward.21} parent=0 // pred_check_branch
    %173 = sbr.rel (0) target = $region21
  $region20: #{featurenet_forward.21} parent=0 // pred_region
    _
  $region21: #{featurenet_forward.21} parent=0 // pred_fallthru
    _
  // Predicated region
  $region22: #{featurenet_forward.21} parent=0 // pred_check
    _
  $region23: #{featurenet_forward.21} parent=0 // pred_check_branch
    %175 = sbr.rel (0) target = $region25
  $region24: #{featurenet_forward.21} parent=0 // pred_region
    _
  $region25: #{featurenet_forward.21} parent=0 // pred_fallthru
    _
  // Predicated region
  $region26: #{featurenet_forward.21} parent=0 // pred_check
    _
  $region27: #{featurenet_forward.21} parent=0 // pred_check_branch
    %177 = sbr.rel (0) target = $region29
  $region28: #{featurenet_forward.21} parent=0 // pred_region
    _
  $region29: #{featurenet_forward.21} parent=0 // pred_fallthru
    _
  // Predicated region
  $region30: #{featurenet_forward.21} parent=0 // pred_check
    _
  $region31: #{featurenet_forward.21} parent=0 // pred_check_branch
    %179 = sbr.rel (0) target = $region33
  $region32: #{featurenet_forward.21} parent=0 // pred_region
    _
  $region33: #{featurenet_forward.21} parent=0 // pred_fallthru
    _

// kernel: featurenet_forward.25
$region0: #{featurenet_forward.25}
  #allocation0 [shape = 'u32[]', space=smem, size = 0x4, offset = 0x4, fixed_abs, tag = 'smem constant byte address 0x4 - core index']
  #allocation1 [shape = 'u32[144,128]{1,0:T(1,128)}', space=vmem, size = 0x12000, scoped, tag = 'internal scratch']
  %s0 = inlined_call_operand.vmem [shape: bf16[32,400], index: 0, kind: input, shape index: {}]
  %s1 = inlined_call_operand.vmem [shape: bf16[400,128], index: 1, kind: input, shape index: {}]
  %s2 = inlined_call_operand.vmem [shape: bf16[32,128], index: 2, kind: output, shape index: {0}]
  %s3 = inlined_call_operand.vmem [shape: f32[1,32,1], index: 3, kind: output, shape index: {1}]
  %s4 = inlined_call_operand.vmem [shape: f32[1,32,1], index: 4, kind: output, shape index: {2}]
  %5 = xla_tuple %s2, %s3, %s4
  %s6 = sld [smem:[#allocation0]]
  $region34: #{featurenet_forward.25} parent=0
    _
  %s8 = ssub.s32 1, %s6
  %s9 = scalar_select 0, %s8, %s6
  // Predicated region
  $region2: #{featurenet_forward.25} parent=0 // pred_check
    _
  $region3: #{featurenet_forward.25} parent=0 // pred_check_branch
    %11 = sbr.rel (0) target = $region5
  $region4: #{featurenet_forward.25} parent=0 // pred_region
    _
  $region5: #{featurenet_forward.25} parent=0 // pred_fallthru
    _
  // Predicated region
  $region6: #{featurenet_forward.25} parent=0 // pred_check
    _
  $region7: #{featurenet_forward.25} parent=0 // pred_check_branch
    %13 = sbr.rel (0) target = $region9
  $region8: #{featurenet_forward.25} parent=0 // pred_region
    _
  $region9: #{featurenet_forward.25} parent=0 // pred_fallthru
    _
  %v15 = vld [vmem:[%s0] sm:$0xff]
  %v16 = vld [vmem:[%s0 + $0x8] sm:$0xff]
  %v17 = vld [vmem:[%s0 + $0x10] sm:$0xff]
  %v18 = vld [vmem:[%s0 + $0x18] sm:$0xff]
  %v19 = vld [vmem:[%s0 + $0x20] sm:$0xff]
  %v20 = vld [vmem:[%s0 + $0x28] sm:$0xff]
  %v21 = vld [vmem:[%s0 + $0x30] sm:$0xff]
  %v22 = vld [vmem:[%s0 + $0x38] sm:$0xff]
  %v23 = vld [vmem:[%s1] sm:$0xf]
  %v24 = vld [vmem:[%s1 + $0x4] sm:$0xf]
  %v25 = vld [vmem:[%s1 + $0x8] sm:$0xf]
  %v26 = vld [vmem:[%s1 + $0xc] sm:$0xf]
  %v27 = vld [vmem:[%s1 + $0x10] sm:$0xf]
  %v28 = vld [vmem:[%s1 + $0x14] sm:$0xf]
  %v29 = vld [vmem:[%s1 + $0x18] sm:$0xf]
  %v30 = vld [vmem:[%s1 + $0x1c] sm:$0xf]
  %v31 = vld [vmem:[%s1 + $0x20] sm:$0xf]
  %v32 = vld [vmem:[%s1 + $0x24] sm:$0xf]
  %v33 = vld [vmem:[%s1 + $0x28] sm:$0xf]
  %v34 = vld [vmem:[%s1 + $0x2c] sm:$0xf]
  %v35 = vld [vmem:[%s1 + $0x30] sm:$0xf]
  %v36 = vld [vmem:[%s1 + $0x34] sm:$0xf]
  %v37 = vld [vmem:[%s1 + $0x38] sm:$0xf]
  %v38 = vld [vmem:[%s1 + $0x3c] sm:$0xf]
  %v39 = vld [vmem:[%s1 + $0x40] sm:$0xf]
  %v40 = vld [vmem:[%s1 + $0x44] sm:$0xf]
  %v41 = vld [vmem:[%s1 + $0x48] sm:$0xf]
  %v42 = vld [vmem:[%s1 + $0x4c] sm:$0xf]
  %v43 = vld [vmem:[%s1 + $0x50] sm:$0xf]
  %v44 = vld [vmem:[%s1 + $0x54] sm:$0xf]
  %v45 = vld [vmem:[%s1 + $0x58] sm:$0xf]
  %v46 = vld [vmem:[%s1 + $0x5c] sm:$0xf]
  %v47 = vld [vmem:[%s1 + $0x60] sm:$0xf]
  %v48 = vld [vmem:[%s1 + $0x64] sm:$0xf]
  %v49 = vld [vmem:[%s1 + $0x68] sm:$0xf]
  %v50 = vld [vmem:[%s1 + $0x6c] sm:$0xf]
  %v51 = vld [vmem:[%s1 + $0x70] sm:$0xf]
  %v52 = vld [vmem:[%s1 + $0x74] sm:$0xf]
  %v53 = vld [vmem:[%s1 + $0x78] sm:$0xf]
  %v54 = vld [vmem:[%s1 + $0x7c] sm:$0xf]
  %v55 = vld [vmem:[%s1 + $0x80] sm:$0xf]
  %v56 = vld [vmem:[%s1 + $0x84] sm:$0xf]
  %v57 = vld [vmem:[%s1 + $0x88] sm:$0xf]
  %v58 = vld [vmem:[%s1 + $0x8c] sm:$0xf]
  %v59 = vld [vmem:[%s1 + $0x90] sm:$0xf]
  %v60 = vld [vmem:[%s1 + $0x94] sm:$0xf]
  %v61 = vld [vmem:[%s1 + $0x98] sm:$0xf]
  %v62 = vld [vmem:[%s1 + $0x9c] sm:$0xf]
  %v63 = vld [vmem:[%s1 + $0xa0] sm:$0xf]
  %v64 = vld [vmem:[%s1 + $0xa4] sm:$0xf]
  %v65 = vld [vmem:[%s1 + $0xa8] sm:$0xf]
  %v66 = vld [vmem:[%s1 + $0xac] sm:$0xf]
  %v67 = vld [vmem:[%s1 + $0xb0] sm:$0xf]
  %v68 = vld [vmem:[%s1 + $0xb4] sm:$0xf]
  %v69 = vld [vmem:[%s1 + $0xb8] sm:$0xf]
  %v70 = vld [vmem:[%s1 + $0xbc] sm:$0xf]
  %v71 = vld [vmem:[%s1 + $0xc0] sm:$0xf]
  %v72 = vld [vmem:[%s1 + $0xc4] sm:$0xf]
  %v81 = vunpack.c.l.b16 %v15
  %v82 = vunpack.c.h.b16 %v15
  %v83 = vunpack.c.l.b16 %v16
  %v84 = vunpack.c.h.b16 %v16
  %v85 = vunpack.c.l.b16 %v17
  %v86 = vunpack.c.h.b16 %v17
  %v87 = vunpack.c.l.b16 %v18
  %v88 = vunpack.c.h.b16 %v18
  %v89 = vunpack.c.l.b16 %v19
  %v90 = vunpack.c.h.b16 %v19
  %v91 = vunpack.c.l.b16 %v20
  %v92 = vunpack.c.h.b16 %v20
  %v93 = vunpack.c.l.b16 %v21
  %v94 = vunpack.c.h.b16 %v21
  %v95 = vunpack.c.l.b16 %v22
  %v96 = vunpack.c.h.b16 %v22
  %v97 = vpack.c.b16 %v85, %v81
  %v98 = vpack.c.b16 %v86, %v82
  %v99 = vpack.c.b16 %v87, %v83
  %v100 = vpack.c.b16 %v88, %v84
  %v101 = vpack.c.b16 %v93, %v89
  %v102 = vpack.c.b16 %v94, %v90
  %v103 = vpack.c.b16 %v95, %v91
  %v104 = vpack.c.b16 %v96, %v92
  %v161 = vunpack.c.l.b16 %v23
  %v162 = vunpack.c.l.b16 %v24
  %v163 = vunpack.c.l.b16 %v25
  %v164 = vunpack.c.l.b16 %v26
  %v165 = vunpack.c.l.b16 %v27
  %v166 = vunpack.c.l.b16 %v28
  %v167 = vunpack.c.l.b16 %v29
  %v168 = vunpack.c.l.b16 %v30
  %v169 = vunpack.c.l.b16 %v31
  %v170 = vunpack.c.l.b16 %v32
  %v171 = vunpack.c.l.b16 %v33
  %v172 = vunpack.c.l.b16 %v34
  %v173 = vunpack.c.l.b16 %v35
  %v174 = vunpack.c.l.b16 %v36
  %v175 = vunpack.c.l.b16 %v37
  %v176 = vunpack.c.l.b16 %v38
  %v177 = vunpack.c.l.b16 %v39
  %v178 = vunpack.c.l.b16 %v40
  %v179 = vunpack.c.l.b16 %v41
  %v180 = vunpack.c.l.b16 %v42
  %v181 = vunpack.c.l.b16 %v43
  %v182 = vunpack.c.l.b16 %v44
  %v183 = vunpack.c.l.b16 %v45
  %v184 = vunpack.c.l.b16 %v46
  %v185 = vunpack.c.l.b16 %v47
  %v186 = vunpack.c.l.b16 %v48
  %v187 = vunpack.c.l.b16 %v49
  %v188 = vunpack.c.l.b16 %v50
  %v189 = vunpack.c.l.b16 %v51
  %v190 = vunpack.c.l.b16 %v52
  %v191 = vunpack.c.l.b16 %v53
  %v192 = vunpack.c.l.b16 %v54
  %v193 = vunpack.c.l.b16 %v55
  %v194 = vunpack.c.l.b16 %v56
  %v195 = vunpack.c.l.b16 %v57
  %v196 = vunpack.c.l.b16 %v58
  %v197 = vunpack.c.l.b16 %v59
  %v198 = vunpack.c.l.b16 %v60
  %v199 = vunpack.c.l.b16 %v61
  %v200 = vunpack.c.l.b16 %v62
  %v201 = vunpack.c.l.b16 %v63
  %v202 = vunpack.c.l.b16 %v64
  %v203 = vunpack.c.l.b16 %v65
  %v204 = vunpack.c.l.b16 %v66
  %v205 = vunpack.c.l.b16 %v67
  %v206 = vunpack.c.l.b16 %v68
  %v207 = vunpack.c.l.b16 %v69
  %v208 = vunpack.c.l.b16 %v70
  %v209 = vunpack.c.l.b16 %v71
  %v210 = vunpack.c.l.b16 %v72
  %v211 = vpack.c.b16 %v162, %v161
  %v212 = vpack.c.b16 %v164, %v163
  %v213 = vpack.c.b16 %v166, %v165
  %v214 = vpack.c.b16 %v168, %v167
  %v215 = vpack.c.b16 %v170, %v169
  %v216 = vpack.c.b16 %v172, %v171
  %v217 = vpack.c.b16 %v174, %v173
  %v218 = vpack.c.b16 %v176, %v175
  %v219 = vpack.c.b16 %v178, %v177
  %v220 = vpack.c.b16 %v180, %v179
  %v221 = vpack.c.b16 %v182, %v181
  %v222 = vpack.c.b16 %v184, %v183
  %v223 = vpack.c.b16 %v186, %v185
  %v224 = vpack.c.b16 %v188, %v187
  %v225 = vpack.c.b16 %v190, %v189
  %v226 = vpack.c.b16 %v192, %v191
  %v227 = vpack.c.b16 %v194, %v193
  %v228 = vpack.c.b16 %v196, %v195
  %v229 = vpack.c.b16 %v198, %v197
  %v230 = vpack.c.b16 %v200, %v199
  %v231 = vpack.c.b16 %v202, %v201
  %v232 = vpack.c.b16 %v204, %v203
  %v233 = vpack.c.b16 %v206, %v205
  %v234 = vpack.c.b16 %v208, %v207
  %v235 = vpack.c.b16 %v210, %v209
  %vm261 = vcmask 130048
  %v263 = vsel %vm261, %v100, 0
  %v266 = vsel %vm261, %v104, 0
  %268 = vmatprep.subr.bf16.mxu0 0
  %269 = vmatpush1.bf16.msra.mxu0 %v218
  %270 = vmatprep.subr.bf16.mxu0 0
  %271 = vmatpush1.bf16.msra.mxu0 %v217
  %272 = vmatprep.subr.bf16.mxu0 0
  %273 = vmatpush1.bf16.msra.mxu0 %v216
  %274 = vmatprep.subr.bf16.mxu0 0
  %275 = vmatpush1.bf16.msra.mxu0 %v215
  %276 = vmatprep.subr.bf16.mxu0 0
  %277 = vmatpush1.bf16.msra.mxu0 %v214
  %278 = vmatprep.subr.bf16.mxu0 0
  %279 = vmatpush1.bf16.msra.mxu0 %v213
  %280 = vmatprep.subr.bf16.mxu0 0
  %281 = vmatpush1.bf16.msra.mxu0 %v212
  %282 = vmatprep.subr.bf16.mxu0 0
  %283 = vmatpush1.bf16.msra.mxu0 %v211
  %284 = vmatprep.subr.bf16.mxu0 0
  %285 = vmatpush2.bf16.msra.mxu0 %v226
  %286 = vmatprep.subr.bf16.mxu0 0
  %287 = vmatpush2.bf16.msra.mxu0 %v225
  %288 = vmatprep.subr.bf16.mxu0 0
  %289 = vmatpush2.bf16.msra.mxu0 %v224
  %290 = vmatprep.subr.bf16.mxu0 0
  %291 = vmatpush2.bf16.msra.mxu0 %v223
  %292 = vmatprep.subr.bf16.mxu0 0
  %293 = vmatpush2.bf16.msra.mxu0 %v222
  %294 = vmatprep.subr.bf16.mxu0 0
  %295 = vmatpush2.bf16.msra.mxu0 %v221
  %296 = vmatprep.subr.bf16.mxu0 0
  %297 = vmatpush2.bf16.msra.mxu0 %v220
  %298 = vmatprep.subr.bf16.mxu0 0
  %299 = vmatpush2.bf16.msra.mxu0 %v219
  %300 = vmatprep.mubr.bf16.mxu0 %v98
  %301 = vmatmul.mubr.bf16.gmra.mxu0 %v97
  %v302 = vpop.f32.mrf.mxu0
  %v303 = vadd.f32 0.0, %v302
  %v304 = vpop.f32.mrf.mxu0
  %v305 = vpop.f32.mrf.mxu0
  %v306 = vadd.f32 0.0, %v305
  %v307 = vpop.f32.mrf.mxu0
  %308 = vmatprep.mubr.bf16.mxu0 %v102
  %309 = vmatmul.mubr.bf16.gmra.mxu0 %v101
  %v310 = vpop.f32.mrf.mxu0
  %v311 = vadd.f32 0.0, %v310
  %v312 = vpop.f32.mrf.mxu0
  %v313 = vpop.f32.mrf.mxu0
  %v314 = vadd.f32 0.0, %v313
  %v315 = vpop.f32.mrf.mxu0
  %316 = vdwg.mxu0
  %317 = vmatprep.subr.bf16.mxu0 0
  %318 = vmatpush1.bf16.msra.mxu0 %v234
  %319 = vmatprep.subr.bf16.mxu0 0
  %320 = vmatpush1.bf16.msra.mxu0 %v233
  %321 = vmatprep.subr.bf16.mxu0 0
  %322 = vmatpush1.bf16.msra.mxu0 %v232
  %323 = vmatprep.subr.bf16.mxu0 0
  %324 = vmatpush1.bf16.msra.mxu0 %v231
  %325 = vmatprep.subr.bf16.mxu0 0
  %326 = vmatpush1.bf16.msra.mxu0 %v230
  %327 = vmatprep.subr.bf16.mxu0 0
  %328 = vmatpush1.bf16.msra.mxu0 %v229
  %329 = vmatprep.subr.bf16.mxu0 0
  %330 = vmatpush1.bf16.msra.mxu0 %v228
  %331 = vmatprep.subr.bf16.mxu0 0
  %332 = vmatpush1.bf16.msra.mxu0 %v227
  %333 = vmatprep.subr.bf16.mxu0 0
  %334 = vmatpush2.bf16.msra.mxu0 0
  %335 = vmatprep.subr.bf16.mxu0 0
  %336 = vmatpush2.bf16.msra.mxu0 0
  %337 = vmatprep.subr.bf16.mxu0 0
  %338 = vmatpush2.bf16.msra.mxu0 0
  %339 = vmatprep.subr.bf16.mxu0 0
  %340 = vmatpush2.bf16.msra.mxu0 0
  %341 = vmatprep.subr.bf16.mxu0 0
  %342 = vmatpush2.bf16.msra.mxu0 0
  %343 = vmatprep.subr.bf16.mxu0 0
  %344 = vmatpush2.bf16.msra.mxu0 0
  %345 = vmatprep.subr.bf16.mxu0 0
  %346 = vmatpush2.bf16.msra.mxu0 0
  %347 = vmatprep.subr.bf16.mxu0 0
  %348 = vmatpush2.bf16.msra.mxu0 %v235
  %349 = vmatprep.mubr.bf16.mxu0 %v263
  %350 = vmatmul.mubr.bf16.gmra.mxu0 %v99
  %v351 = vpop.f32.mrf.mxu0
  %v352 = vadd.f32 %v303, %v351
  %v353 = vpop.f32.mrf.mxu0
  %v354 = vpop.f32.mrf.mxu0
  %v355 = vadd.f32 %v306, %v354
  %v356 = vpop.f32.mrf.mxu0
  %357 = vmatprep.mubr.bf16.mxu0 %v266
  %358 = vmatmul.mubr.bf16.gmra.mxu0 %v103
  %v359 = vpop.f32.mrf.mxu0
  %v360 = vadd.f32 %v311, %v359
  %v361 = vpop.f32.mrf.mxu0
  %v362 = vpop.f32.mrf.mxu0
  %v363 = vadd.f32 %v314, %v362
  %v364 = vpop.f32.mrf.mxu0
  %365 = vdwg.mxu0
  %v366 = vpack.c.bf16 %v355, %v352
  %v367 = vpack.c.bf16 %v363, %v360
  %v370 = vunpack.c.l.b16 %v366
  %v371 = vunpack.c.h.b16 %v366
  %v372 = vunpack.c.l.b16 %v367
  %v373 = vunpack.c.h.b16 %v367
  %v374 = vpack.c.b16 %v370, %v370
  %v375 = vpack.c.b16 %v371, %v371
  %v376 = vpack.c.b16 %v372, %v372
  %v377 = vpack.c.b16 %v373, %v373
  %382 = vst [vmem:[%s2] sm:$0xf] %v374
  %383 = vst [vmem:[%s2 + $0x4] sm:$0xf] %v375
  %384 = vst [vmem:[%s2 + $0x8] sm:$0xf] %v376
  %385 = vst [vmem:[%s2 + $0xc] sm:$0xf] %v377
  %386 = vadd.xlane.f32.xlu0 %v352
  %v387 = vpop.xlane.xlu0 %386
  %388 = vadd.xlane.f32.xlu0 %v355
  %v389 = vpop.xlane.xlu0 %388
  %390 = vadd.xlane.f32.xlu0 %v360
  %v391 = vpop.xlane.xlu0 %390
  %392 = vadd.xlane.f32.xlu0 %v363
  %v393 = vpop.xlane.xlu0 %392
  %vm394 = vcmask 7168
  %395 = vst.msk [vmem:[%s3] sm:$0xff] %vm394, %v387
  %396 = vst.msk [vmem:[%s3 + $0x8] sm:$0xff] %vm394, %v389
  %397 = vst.msk [vmem:[%s3 + $0x10] sm:$0xff] %vm394, %v391
  %398 = vst.msk [vmem:[%s3 + $0x18] sm:$0xff] %vm394, %v393
  %v399 = vmul.f32 %v352, %v352
  %v400 = vmul.f32 %v355, %v355
  %v401 = vmul.f32 %v360, %v360
  %v402 = vmul.f32 %v363, %v363
  %403 = vadd.xlane.f32.xlu0 %v399
  %v404 = vpop.xlane.xlu0 %403
  %405 = vadd.xlane.f32.xlu0 %v400
  %v406 = vpop.xlane.xlu0 %405
  %407 = vadd.xlane.f32.xlu0 %v401
  %v408 = vpop.xlane.xlu0 %407
  %409 = vadd.xlane.f32.xlu0 %v402
  %v410 = vpop.xlane.xlu0 %409
  %411 = vst.msk [vmem:[%s4] sm:$0xff] %vm394, %v404
  %412 = vst.msk [vmem:[%s4 + $0x8] sm:$0xff] %vm394, %v406
  %413 = vst.msk [vmem:[%s4 + $0x10] sm:$0xff] %vm394, %v408
  %414 = vst.msk [vmem:[%s4 + $0x18] sm:$0xff] %vm394, %v410
  // Predicated region
  $region10: #{featurenet_forward.25} parent=0 // pred_check
    _
  $region11: #{featurenet_forward.25} parent=0 // pred_check_branch
    %416 = sbr.rel (0) target = $region13
  $region12: #{featurenet_forward.25} parent=0 // pred_region
    _
  $region13: #{featurenet_forward.25} parent=0 // pred_fallthru
    _
  // Predicated region
  $region14: #{featurenet_forward.25} parent=0 // pred_check
    _
  $region15: #{featurenet_forward.25} parent=0 // pred_check_branch
    %418 = sbr.rel (0) target = $region17
  $region16: #{featurenet_forward.25} parent=0 // pred_region
    _
  $region17: #{featurenet_forward.25} parent=0 // pred_fallthru
    _
  // Predicated region
  $region18: #{featurenet_forward.25} parent=0 // pred_check
    _
  $region19: #{featurenet_forward.25} parent=0 // pred_check_branch
    %420 = sbr.rel (0) target = $region21
  $region20: #{featurenet_forward.25} parent=0 // pred_region
    _
  $region21: #{featurenet_forward.25} parent=0 // pred_fallthru
    _
  // Predicated region
  $region22: #{featurenet_forward.25} parent=0 // pred_check
    _
  $region23: #{featurenet_forward.25} parent=0 // pred_check_branch
    %422 = sbr.rel (0) target = $region25
  $region24: #{featurenet_forward.25} parent=0 // pred_region
    _
  $region25: #{featurenet_forward.25} parent=0 // pred_fallthru
    _
  // Predicated region
  $region26: #{featurenet_forward.25} parent=0 // pred_check
    _
  $region27: #{featurenet_forward.25} parent=0 // pred_check_branch
    %424 = sbr.rel (0) target = $region29
  $region28: #{featurenet_forward.25} parent=0 // pred_region
    _
  $region29: #{featurenet_forward.25} parent=0 // pred_fallthru
    _
  // Predicated region
  $region30: #{featurenet_forward.25} parent=0 // pred_check
    _
  $region31: #{featurenet_forward.25} parent=0 // pred_check_branch
    %426 = sbr.rel (0) target = $region33
  $region32: #{featurenet_forward.25} parent=0 // pred_region
    _
  $region33: #{featurenet_forward.25} parent=0 // pred_fallthru
    _

// kernel: featurenet_forward.26
$region0: #{featurenet_forward.26}
  #allocation0 [shape = 'u32[]', space=smem, size = 0x4, offset = 0x4, fixed_abs, tag = 'smem constant byte address 0x4 - core index']
  #allocation1 [shape = 'u32[144,128]{1,0:T(1,128)}', space=vmem, size = 0x12000, scoped, tag = 'internal scratch']
  %s0 = inlined_call_operand.vmem [shape: f32[32,1], index: 0, kind: input, shape index: {}]
  %s1 = inlined_call_operand.vmem [shape: f32[32,1], index: 1, kind: input, shape index: {}]
  %s2 = inlined_call_operand.vmem [shape: bf16[32,128], index: 2, kind: input, shape index: {}]
  %s3 = inlined_call_operand.vmem [shape: bf16[32,128], index: 3, kind: output, shape index: {}]
  %s4 = sld [smem:[#allocation0]]
  $region22: #{featurenet_forward.26} parent=0
    _
  %s6 = ssub.s32 1, %s4
  %s7 = scalar_select 0, %s6, %s4
  // Predicated region
  $region2: #{featurenet_forward.26} parent=0 // pred_check
    _
  $region3: #{featurenet_forward.26} parent=0 // pred_check_branch
    %9 = sbr.rel (0) target = $region5
  $region4: #{featurenet_forward.26} parent=0 // pred_region
    _
  $region5: #{featurenet_forward.26} parent=0 // pred_fallthru
    _
  // Predicated region
  $region6: #{featurenet_forward.26} parent=0 // pred_check
    _
  $region7: #{featurenet_forward.26} parent=0 // pred_check_branch
    %11 = sbr.rel (0) target = $region9
  $region8: #{featurenet_forward.26} parent=0 // pred_region
    _
  $region9: #{featurenet_forward.26} parent=0 // pred_fallthru
    _
  // Predicated region
  $region10: #{featurenet_forward.26} parent=0 // pred_check
    _
  $region11: #{featurenet_forward.26} parent=0 // pred_check_branch
    %13 = sbr.rel (0) target = $region13
  $region12: #{featurenet_forward.26} parent=0 // pred_region
    _
  $region13: #{featurenet_forward.26} parent=0 // pred_fallthru
    _
  %v14 = vld [vmem:[%s2] sm:$0xf]
  %v15 = vld [vmem:[%s2 + $0x4] sm:$0xf]
  %v16 = vld [vmem:[%s2 + $0x8] sm:$0xf]
  %v17 = vld [vmem:[%s2 + $0xc] sm:$0xf]
  %v18 = vunpack.c.l.bf16 %v14
  %v19 = vunpack.c.l.bf16 %v15
  %v20 = vunpack.c.l.bf16 %v16
  %v21 = vunpack.c.l.bf16 %v17
  %v22 = vld [vmem:[%s0] sm:$0xff]
  %v23 = vld [vmem:[%s0 + $0x8] sm:$0xff]
  %v24 = vld [vmem:[%s0 + $0x10] sm:$0xff]
  %v25 = vld [vmem:[%s0 + $0x18] sm:$0xff]
  %27 = vset.pattern.permute.xlu0 0
  %28 = vperm.xlu0 %27, %v22
  %v29 = vpop.permute.xlu0 %28
  %32 = vset.pattern.permute.xlu0 0
  %33 = vperm.xlu0 %32, %v23
  %v34 = vpop.permute.xlu0 %33
  %37 = vset.pattern.permute.xlu0 0
  %38 = vperm.xlu0 %37, %v24
  %v39 = vpop.permute.xlu0 %38
  %42 = vset.pattern.permute.xlu0 0
  %43 = vperm.xlu0 %42, %v25
  %v44 = vpop.permute.xlu0 %43
  %v46 = vmul.f32 %v18, %v29
  %v47 = vmul.f32 %v19, %v34
  %v48 = vmul.f32 %v20, %v39
  %v49 = vmul.f32 %v21, %v44
  %v50 = vld [vmem:[%s1] sm:$0xff]
  %v51 = vld [vmem:[%s1 + $0x8] sm:$0xff]
  %v52 = vld [vmem:[%s1 + $0x10] sm:$0xff]
  %v53 = vld [vmem:[%s1 + $0x18] sm:$0xff]
  %55 = vset.pattern.permute.xlu0 0
  %56 = vperm.xlu0 %55, %v50
  %v57 = vpop.permute.xlu0 %56
  %60 = vset.pattern.permute.xlu0 0
  %61 = vperm.xlu0 %60, %v51
  %v62 = vpop.permute.xlu0 %61
  %65 = vset.pattern.permute.xlu0 0
  %66 = vperm.xlu0 %65, %v52
  %v67 = vpop.permute.xlu0 %66
  %70 = vset.pattern.permute.xlu0 0
  %71 = vperm.xlu0 %70, %v53
  %v72 = vpop.permute.xlu0 %71
  %v74 = vadd.f32 %v46, %v57
  %v75 = vadd.f32 %v47, %v62
  %v76 = vadd.f32 %v48, %v67
  %v77 = vadd.f32 %v49, %v72
  %v78 = vmax.f32 %v74, 0.0
  %v79 = vmax.f32 %v75, 0.0
  %v80 = vmax.f32 %v76, 0.0
  %v81 = vmax.f32 %v77, 0.0
  %v82 = vpack.c.bf16 %v79, %v78
  %v83 = vpack.c.bf16 %v81, %v80
  %v86 = vunpack.c.l.b16 %v82
  %v87 = vunpack.c.h.b16 %v82
  %v88 = vunpack.c.l.b16 %v83
  %v89 = vunpack.c.h.b16 %v83
  %v90 = vpack.c.b16 %v86, %v86
  %v91 = vpack.c.b16 %v87, %v87
  %v92 = vpack.c.b16 %v88, %v88
  %v93 = vpack.c.b16 %v89, %v89
  %98 = vst [vmem:[%s3] sm:$0xf] %v90
  %99 = vst [vmem:[%s3 + $0x4] sm:$0xf] %v91
  %100 = vst [vmem:[%s3 + $0x8] sm:$0xf] %v92
  %101 = vst [vmem:[%s3 + $0xc] sm:$0xf] %v93
  // Predicated region
  $region14: #{featurenet_forward.26} parent=0 // pred_check
    _
  $region15: #{featurenet_forward.26} parent=0 // pred_check_branch
    %103 = sbr.rel (0) target = $region17
  $region16: #{featurenet_forward.26} parent=0 // pred_region
    _
  $region17: #{featurenet_forward.26} parent=0 // pred_fallthru
    _
  // Predicated region
  $region18: #{featurenet_forward.26} parent=0 // pred_check
    _
  $region19: #{featurenet_forward.26} parent=0 // pred_check_branch
    %105 = sbr.rel (0) target = $region21
  $region20: #{featurenet_forward.26} parent=0 // pred_region
    _
  $region21: #{featurenet_forward.26} parent=0 // pred_fallthru
    _

// kernel: featurenet_forward.27
$region0: #{featurenet_forward.27}
  #allocation0 [shape = 'u32[]', space=smem, size = 0x4, offset = 0x4, fixed_abs, tag = 'smem constant byte address 0x4 - core index']
  #allocation1 [shape = 'u32[144,128]{1,0:T(1,128)}', space=vmem, size = 0x12000, scoped, tag = 'internal scratch']
  %s0 = inlined_call_operand.vmem [shape: bf16[32,288], index: 0, kind: input, shape index: {}]
  %s1 = inlined_call_operand.vmem [shape: bf16[288,128], index: 1, kind: input, shape index: {}]
  %s2 = inlined_call_operand.vmem [shape: bf16[32,128], index: 2, kind: output, shape index: {0}]
  %s3 = inlined_call_operand.vmem [shape: f32[1,32,1], index: 3, kind: output, shape index: {1}]
  %s4 = inlined_call_operand.vmem [shape: f32[1,32,1], index: 4, kind: output, shape index: {2}]
  %5 = xla_tuple %s2, %s3, %s4
  %s6 = sld [smem:[#allocation0]]
  $region34: #{featurenet_forward.27} parent=0
    _
  %s8 = ssub.s32 1, %s6
  %s9 = scalar_select 0, %s8, %s6
  // Predicated region
  $region2: #{featurenet_forward.27} parent=0 // pred_check
    _
  $region3: #{featurenet_forward.27} parent=0 // pred_check_branch
    %11 = sbr.rel (0) target = $region5
  $region4: #{featurenet_forward.27} parent=0 // pred_region
    _
  $region5: #{featurenet_forward.27} parent=0 // pred_fallthru
    _
  // Predicated region
  $region6: #{featurenet_forward.27} parent=0 // pred_check
    _
  $region7: #{featurenet_forward.27} parent=0 // pred_check_branch
    %13 = sbr.rel (0) target = $region9
  $region8: #{featurenet_forward.27} parent=0 // pred_region
    _
  $region9: #{featurenet_forward.27} parent=0 // pred_fallthru
    _
  %v15 = vld [vmem:[%s0] sm:$0xff]
  %v16 = vld [vmem:[%s0 + $0x8] sm:$0xf]
  %v17 = vld [vmem:[%s0 + $0xc] sm:$0xff]
  %v18 = vld [vmem:[%s0 + $0x14] sm:$0xf]
  %v19 = vld [vmem:[%s0 + $0x18] sm:$0xff]
  %v20 = vld [vmem:[%s0 + $0x20] sm:$0xf]
  %v21 = vld [vmem:[%s0 + $0x24] sm:$0xff]
  %v22 = vld [vmem:[%s0 + $0x2c] sm:$0xf]
  %v23 = vld [vmem:[%s1] sm:$0xf]
  %v24 = vld [vmem:[%s1 + $0x4] sm:$0xf]
  %v25 = vld [vmem:[%s1 + $0x8] sm:$0xf]
  %v26 = vld [vmem:[%s1 + $0xc] sm:$0xf]
  %v27 = vld [vmem:[%s1 + $0x10] sm:$0xf]
  %v28 = vld [vmem:[%s1 + $0x14] sm:$0xf]
  %v29 = vld [vmem:[%s1 + $0x18] sm:$0xf]
  %v30 = vld [vmem:[%s1 + $0x1c] sm:$0xf]
  %v31 = vld [vmem:[%s1 + $0x20] sm:$0xf]
  %v32 = vld [vmem:[%s1 + $0x24] sm:$0xf]
  %v33 = vld [vmem:[%s1 + $0x28] sm:$0xf]
  %v34 = vld [vmem:[%s1 + $0x2c] sm:$0xf]
  %v35 = vld [vmem:[%s1 + $0x30] sm:$0xf]
  %v36 = vld [vmem:[%s1 + $0x34] sm:$0xf]
  %v37 = vld [vmem:[%s1 + $0x38] sm:$0xf]
  %v38 = vld [vmem:[%s1 + $0x3c] sm:$0xf]
  %v39 = vld [vmem:[%s1 + $0x40] sm:$0xf]
  %v40 = vld [vmem:[%s1 + $0x44] sm:$0xf]
  %v41 = vld [vmem:[%s1 + $0x48] sm:$0xf]
  %v42 = vld [vmem:[%s1 + $0x4c] sm:$0xf]
  %v43 = vld [vmem:[%s1 + $0x50] sm:$0xf]
  %v44 = vld [vmem:[%s1 + $0x54] sm:$0xf]
  %v45 = vld [vmem:[%s1 + $0x58] sm:$0xf]
  %v46 = vld [vmem:[%s1 + $0x5c] sm:$0xf]
  %v47 = vld [vmem:[%s1 + $0x60] sm:$0xf]
  %v48 = vld [vmem:[%s1 + $0x64] sm:$0xf]
  %v49 = vld [vmem:[%s1 + $0x68] sm:$0xf]
  %v50 = vld [vmem:[%s1 + $0x6c] sm:$0xf]
  %v51 = vld [vmem:[%s1 + $0x70] sm:$0xf]
  %v52 = vld [vmem:[%s1 + $0x74] sm:$0xf]
  %v53 = vld [vmem:[%s1 + $0x78] sm:$0xf]
  %v54 = vld [vmem:[%s1 + $0x7c] sm:$0xf]
  %v55 = vld [vmem:[%s1 + $0x80] sm:$0xf]
  %v56 = vld [vmem:[%s1 + $0x84] sm:$0xf]
  %v57 = vld [vmem:[%s1 + $0x88] sm:$0xf]
  %v58 = vld [vmem:[%s1 + $0x8c] sm:$0xf]
  %v67 = vunpack.c.l.b16 %v15
  %v68 = vunpack.c.h.b16 %v15
  %v69 = vunpack.c.l.b16 %v16
  %v70 = vunpack.c.l.b16 %v17
  %v71 = vunpack.c.h.b16 %v17
  %v72 = vunpack.c.l.b16 %v18
  %v73 = vunpack.c.l.b16 %v19
  %v74 = vunpack.c.h.b16 %v19
  %v75 = vunpack.c.l.b16 %v20
  %v76 = vunpack.c.l.b16 %v21
  %v77 = vunpack.c.h.b16 %v21
  %v78 = vunpack.c.l.b16 %v22
  %v79 = vpack.c.b16 %v70, %v67
  %v80 = vpack.c.b16 %v71, %v68
  %v81 = vpack.c.b16 %v72, %v69
  %v82 = vpack.c.b16 %v76, %v73
  %v83 = vpack.c.b16 %v77, %v74
  %v84 = vpack.c.b16 %v78, %v75
  %v125 = vunpack.c.l.b16 %v23
  %v126 = vunpack.c.l.b16 %v24
  %v127 = vunpack.c.l.b16 %v25
  %v128 = vunpack.c.l.b16 %v26
  %v129 = vunpack.c.l.b16 %v27
  %v130 = vunpack.c.l.b16 %v28
  %v131 = vunpack.c.l.b16 %v29
  %v132 = vunpack.c.l.b16 %v30
  %v133 = vunpack.c.l.b16 %v31
  %v134 = vunpack.c.l.b16 %v32
  %v135 = vunpack.c.l.b16 %v33
  %v136 = vunpack.c.l.b16 %v34
  %v137 = vunpack.c.l.b16 %v35
  %v138 = vunpack.c.l.b16 %v36
  %v139 = vunpack.c.l.b16 %v37
  %v140 = vunpack.c.l.b16 %v38
  %v141 = vunpack.c.l.b16 %v39
  %v142 = vunpack.c.l.b16 %v40
  %v143 = vunpack.c.l.b16 %v41
  %v144 = vunpack.c.l.b16 %v42
  %v145 = vunpack.c.l.b16 %v43
  %v146 = vunpack.c.l.b16 %v44
  %v147 = vunpack.c.l.b16 %v45
  %v148 = vunpack.c.l.b16 %v46
  %v149 = vunpack.c.l.b16 %v47
  %v150 = vunpack.c.l.b16 %v48
  %v151 = vunpack.c.l.b16 %v49
  %v152 = vunpack.c.l.b16 %v50
  %v153 = vunpack.c.l.b16 %v51
  %v154 = vunpack.c.l.b16 %v52
  %v155 = vunpack.c.l.b16 %v53
  %v156 = vunpack.c.l.b16 %v54
  %v157 = vunpack.c.l.b16 %v55
  %v158 = vunpack.c.l.b16 %v56
  %v159 = vunpack.c.l.b16 %v57
  %v160 = vunpack.c.l.b16 %v58
  %v161 = vpack.c.b16 %v126, %v125
  %v162 = vpack.c.b16 %v128, %v127
  %v163 = vpack.c.b16 %v130, %v129
  %v164 = vpack.c.b16 %v132, %v131
  %v165 = vpack.c.b16 %v134, %v133
  %v166 = vpack.c.b16 %v136, %v135
  %v167 = vpack.c.b16 %v138, %v137
  %v168 = vpack.c.b16 %v140, %v139
  %v169 = vpack.c.b16 %v142, %v141
  %v170 = vpack.c.b16 %v144, %v143
  %v171 = vpack.c.b16 %v146, %v145
  %v172 = vpack.c.b16 %v148, %v147
  %v173 = vpack.c.b16 %v150, %v149
  %v174 = vpack.c.b16 %v152, %v151
  %v175 = vpack.c.b16 %v154, %v153
  %v176 = vpack.c.b16 %v156, %v155
  %v177 = vpack.c.b16 %v158, %v157
  %v178 = vpack.c.b16 %v160, %v159
  %vm197 = vcmask 261120
  %v199 = vsel %vm197, %v81, 0
  %v202 = vsel %vm197, %v84, 0
  %204 = vmatprep.subr.bf16.mxu0 0
  %205 = vmatpush1.bf16.msra.mxu0 %v168
  %206 = vmatprep.subr.bf16.mxu0 0
  %207 = vmatpush1.bf16.msra.mxu0 %v167
  %208 = vmatprep.subr.bf16.mxu0 0
  %209 = vmatpush1.bf16.msra.mxu0 %v166
  %210 = vmatprep.subr.bf16.mxu0 0
  %211 = vmatpush1.bf16.msra.mxu0 %v165
  %212 = vmatprep.subr.bf16.mxu0 0
  %213 = vmatpush1.bf16.msra.mxu0 %v164
  %214 = vmatprep.subr.bf16.mxu0 0
  %215 = vmatpush1.bf16.msra.mxu0 %v163
  %216 = vmatprep.subr.bf16.mxu0 0
  %217 = vmatpush1.bf16.msra.mxu0 %v162
  %218 = vmatprep.subr.bf16.mxu0 0
  %219 = vmatpush1.bf16.msra.mxu0 %v161
  %220 = vmatprep.subr.bf16.mxu0 0
  %221 = vmatpush2.bf16.msra.mxu0 %v176
  %222 = vmatprep.subr.bf16.mxu0 0
  %223 = vmatpush2.bf16.msra.mxu0 %v175
  %224 = vmatprep.subr.bf16.mxu0 0
  %225 = vmatpush2.bf16.msra.mxu0 %v174
  %226 = vmatprep.subr.bf16.mxu0 0
  %227 = vmatpush2.bf16.msra.mxu0 %v173
  %228 = vmatprep.subr.bf16.mxu0 0
  %229 = vmatpush2.bf16.msra.mxu0 %v172
  %230 = vmatprep.subr.bf16.mxu0 0
  %231 = vmatpush2.bf16.msra.mxu0 %v171
  %232 = vmatprep.subr.bf16.mxu0 0
  %233 = vmatpush2.bf16.msra.mxu0 %v170
  %234 = vmatprep.subr.bf16.mxu0 0
  %235 = vmatpush2.bf16.msra.mxu0 %v169
  %236 = vmatprep.mubr.bf16.mxu0 %v80
  %237 = vmatmul.mubr.bf16.gmra.mxu0 %v79
  %v238 = vpop.f32.mrf.mxu0
  %v239 = vadd.f32 0.0, %v238
  %v240 = vpop.f32.mrf.mxu0
  %v241 = vpop.f32.mrf.mxu0
  %v242 = vadd.f32 0.0, %v241
  %v243 = vpop.f32.mrf.mxu0
  %244 = vmatprep.mubr.bf16.mxu0 %v83
  %245 = vmatmul.mubr.bf16.gmra.mxu0 %v82
  %v246 = vpop.f32.mrf.mxu0
  %v247 = vadd.f32 0.0, %v246
  %v248 = vpop.f32.mrf.mxu0
  %v249 = vpop.f32.mrf.mxu0
  %v250 = vadd.f32 0.0, %v249
  %v251 = vpop.f32.mrf.mxu0
  %252 = vdwg.mxu0
  %253 = vmatprep.subr.bf16.mxu0 0
  %254 = vmatpush1.bf16.msra.mxu0 0
  %255 = vmatprep.subr.bf16.mxu0 0
  %256 = vmatpush1.bf16.msra.mxu0 0
  %257 = vmatprep.subr.bf16.mxu0 0
  %258 = vmatpush1.bf16.msra.mxu0 0
  %259 = vmatprep.subr.bf16.mxu0 0
  %260 = vmatpush1.bf16.msra.mxu0 0
  %261 = vmatprep.subr.bf16.mxu0 0
  %262 = vmatpush1.bf16.msra.mxu0 0
  %263 = vmatprep.subr.bf16.mxu0 0
  %264 = vmatpush1.bf16.msra.mxu0 0
  %265 = vmatprep.subr.bf16.mxu0 0
  %266 = vmatpush1.bf16.msra.mxu0 %v178
  %267 = vmatprep.subr.bf16.mxu0 0
  %268 = vmatpush1.bf16.msra.mxu0 %v177
  %269 = vmatprep.subr.bf16.mxu0 0
  %270 = vmatpush2.bf16.msra.mxu0 0
  %271 = vmatprep.subr.bf16.mxu0 0
  %272 = vmatpush2.bf16.msra.mxu0 0
  %273 = vmatprep.subr.bf16.mxu0 0
  %274 = vmatpush2.bf16.msra.mxu0 0
  %275 = vmatprep.subr.bf16.mxu0 0
  %276 = vmatpush2.bf16.msra.mxu0 0
  %277 = vmatprep.subr.bf16.mxu0 0
  %278 = vmatpush2.bf16.msra.mxu0 0
  %279 = vmatprep.subr.bf16.mxu0 0
  %280 = vmatpush2.bf16.msra.mxu0 0
  %281 = vmatprep.subr.bf16.mxu0 0
  %282 = vmatpush2.bf16.msra.mxu0 0
  %283 = vmatprep.subr.bf16.mxu0 0
  %284 = vmatpush2.bf16.msra.mxu0 0
  %285 = vmatprep.mubr.bf16.mxu0 0
  %286 = vmatmul.mubr.bf16.gmra.mxu0 %v199
  %v287 = vpop.f32.mrf.mxu0
  %v288 = vadd.f32 %v239, %v287
  %v289 = vpop.f32.mrf.mxu0
  %v290 = vpop.f32.mrf.mxu0
  %v291 = vadd.f32 %v242, %v290
  %v292 = vpop.f32.mrf.mxu0
  %293 = vmatprep.mubr.bf16.mxu0 0
  %294 = vmatmul.mubr.bf16.gmra.mxu0 %v202
  %v295 = vpop.f32.mrf.mxu0
  %v296 = vadd.f32 %v247, %v295
  %v297 = vpop.f32.mrf.mxu0
  %v298 = vpop.f32.mrf.mxu0
  %v299 = vadd.f32 %v250, %v298
  %v300 = vpop.f32.mrf.mxu0
  %301 = vdwg.mxu0
  %v302 = vpack.c.bf16 %v291, %v288
  %v303 = vpack.c.bf16 %v299, %v296
  %v306 = vunpack.c.l.b16 %v302
  %v307 = vunpack.c.h.b16 %v302
  %v308 = vunpack.c.l.b16 %v303
  %v309 = vunpack.c.h.b16 %v303
  %v310 = vpack.c.b16 %v306, %v306
  %v311 = vpack.c.b16 %v307, %v307
  %v312 = vpack.c.b16 %v308, %v308
  %v313 = vpack.c.b16 %v309, %v309
  %318 = vst [vmem:[%s2] sm:$0xf] %v310
  %319 = vst [vmem:[%s2 + $0x4] sm:$0xf] %v311
  %320 = vst [vmem:[%s2 + $0x8] sm:$0xf] %v312
  %321 = vst [vmem:[%s2 + $0xc] sm:$0xf] %v313
  %322 = vadd.xlane.f32.xlu0 %v288
  %v323 = vpop.xlane.xlu0 %322
  %324 = vadd.xlane.f32.xlu0 %v291
  %v325 = vpop.xlane.xlu0 %324
  %326 = vadd.xlane.f32.xlu0 %v296
  %v327 = vpop.xlane.xlu0 %326
  %328 = vadd.xlane.f32.xlu0 %v299
  %v329 = vpop.xlane.xlu0 %328
  %vm330 = vcmask 7168
  %331 = vst.msk [vmem:[%s3] sm:$0xff] %vm330, %v323
  %332 = vst.msk [vmem:[%s3 + $0x8] sm:$0xff] %vm330, %v325
  %333 = vst.msk [vmem:[%s3 + $0x10] sm:$0xff] %vm330, %v327
  %334 = vst.msk [vmem:[%s3 + $0x18] sm:$0xff] %vm330, %v329
  %v335 = vmul.f32 %v288, %v288
  %v336 = vmul.f32 %v291, %v291
  %v337 = vmul.f32 %v296, %v296
  %v338 = vmul.f32 %v299, %v299
  %339 = vadd.xlane.f32.xlu0 %v335
  %v340 = vpop.xlane.xlu0 %339
  %341 = vadd.xlane.f32.xlu0 %v336
  %v342 = vpop.xlane.xlu0 %341
  %343 = vadd.xlane.f32.xlu0 %v337
  %v344 = vpop.xlane.xlu0 %343
  %345 = vadd.xlane.f32.xlu0 %v338
  %v346 = vpop.xlane.xlu0 %345
  %347 = vst.msk [vmem:[%s4] sm:$0xff] %vm330, %v340
  %348 = vst.msk [vmem:[%s4 + $0x8] sm:$0xff] %vm330, %v342
  %349 = vst.msk [vmem:[%s4 + $0x10] sm:$0xff] %vm330, %v344
  %350 = vst.msk [vmem:[%s4 + $0x18] sm:$0xff] %vm330, %v346
  // Predicated region
  $region10: #{featurenet_forward.27} parent=0 // pred_check
    _
  $region11: #{featurenet_forward.27} parent=0 // pred_check_branch
    %352 = sbr.rel (0) target = $region13
  $region12: #{featurenet_forward.27} parent=0 // pred_region
    _
  $region13: #{featurenet_forward.27} parent=0 // pred_fallthru
    _
  // Predicated region
  $region14: #{featurenet_forward.27} parent=0 // pred_check
    _
  $region15: #{featurenet_forward.27} parent=0 // pred_check_branch
    %354 = sbr.rel (0) target = $region17
  $region16: #{featurenet_forward.27} parent=0 // pred_region
    _
  $region17: #{featurenet_forward.27} parent=0 // pred_fallthru
    _
  // Predicated region
  $region18: #{featurenet_forward.27} parent=0 // pred_check
    _
  $region19: #{featurenet_forward.27} parent=0 // pred_check_branch
    %356 = sbr.rel (0) target = $region21
  $region20: #{featurenet_forward.27} parent=0 // pred_region
    _
  $region21: #{featurenet_forward.27} parent=0 // pred_fallthru
    _
  // Predicated region
  $region22: #{featurenet_forward.27} parent=0 // pred_check
    _
  $region23: #{featurenet_forward.27} parent=0 // pred_check_branch
    %358 = sbr.rel (0) target = $region25
  $region24: #{featurenet_forward.27} parent=0 // pred_region
    _
  $region25: #{featurenet_forward.27} parent=0 // pred_fallthru
    _
  // Predicated region
  $region26: #{featurenet_forward.27} parent=0 // pred_check
    _
  $region27: #{featurenet_forward.27} parent=0 // pred_check_branch
    %360 = sbr.rel (0) target = $region29
  $region28: #{featurenet_forward.27} parent=0 // pred_region
    _
  $region29: #{featurenet_forward.27} parent=0 // pred_fallthru
    _
  // Predicated region
  $region30: #{featurenet_forward.27} parent=0 // pred_check
    _
  $region31: #{featurenet_forward.27} parent=0 // pred_check_branch
    %362 = sbr.rel (0) target = $region33
  $region32: #{featurenet_forward.27} parent=0 // pred_region
    _
  $region33: #{featurenet_forward.27} parent=0 // pred_fallthru
    _

// kernel: featurenet_forward.29
$region0: #{featurenet_forward.29}
  #allocation0 [shape = 'u32[]', space=smem, size = 0x4, offset = 0x4, fixed_abs, tag = 'smem constant byte address 0x4 - core index']
  #allocation1 [shape = 'u32[144,128]{1,0:T(1,128)}', space=vmem, size = 0x12000, scoped, tag = 'internal scratch']
  %s0 = inlined_call_operand.vmem [shape: bf16[32,288], index: 0, kind: input, shape index: {}]
  %s1 = inlined_call_operand.vmem [shape: f32[32,1], index: 1, kind: input, shape index: {}]
  %s2 = inlined_call_operand.vmem [shape: bf16[288,128], index: 2, kind: input, shape index: {}]
  %s3 = inlined_call_operand.vmem [shape: f32[32,128], index: 3, kind: output, shape index: {}]
  %s4 = sld [smem:[#allocation0]]
  $region22: #{featurenet_forward.29} parent=0
    _
  %s6 = ssub.s32 1, %s4
  %s7 = scalar_select 0, %s6, %s4
  // Predicated region
  $region2: #{featurenet_forward.29} parent=0 // pred_check
    _
  $region3: #{featurenet_forward.29} parent=0 // pred_check_branch
    %9 = sbr.rel (0) target = $region5
  $region4: #{featurenet_forward.29} parent=0 // pred_region
    _
  $region5: #{featurenet_forward.29} parent=0 // pred_fallthru
    _
  // Predicated region
  $region6: #{featurenet_forward.29} parent=0 // pred_check
    _
  $region7: #{featurenet_forward.29} parent=0 // pred_check_branch
    %11 = sbr.rel (0) target = $region9
  $region8: #{featurenet_forward.29} parent=0 // pred_region
    _
  $region9: #{featurenet_forward.29} parent=0 // pred_fallthru
    _
  // Predicated region
  $region10: #{featurenet_forward.29} parent=0 // pred_check
    _
  $region11: #{featurenet_forward.29} parent=0 // pred_check_branch
    %13 = sbr.rel (0) target = $region13
  $region12: #{featurenet_forward.29} parent=0 // pred_region
    _
  $region13: #{featurenet_forward.29} parent=0 // pred_fallthru
    _
  %v15 = vld [vmem:[%s0] sm:$0xff]
  %v16 = vld [vmem:[%s0 + $0x8] sm:$0xf]
  %v17 = vld [vmem:[%s0 + $0xc] sm:$0xff]
  %v18 = vld [vmem:[%s0 + $0x14] sm:$0xf]
  %v19 = vld [vmem:[%s0 + $0x18] sm:$0xff]
  %v20 = vld [vmem:[%s0 + $0x20] sm:$0xf]
  %v21 = vld [vmem:[%s0 + $0x24] sm:$0xff]
  %v22 = vld [vmem:[%s0 + $0x2c] sm:$0xf]
  %v23 = vld [vmem:[%s2] sm:$0xf]
  %v24 = vld [vmem:[%s2 + $0x4] sm:$0xf]
  %v25 = vld [vmem:[%s2 + $0x8] sm:$0xf]
  %v26 = vld [vmem:[%s2 + $0xc] sm:$0xf]
  %v27 = vld [vmem:[%s2 + $0x10] sm:$0xf]
  %v28 = vld [vmem:[%s2 + $0x14] sm:$0xf]
  %v29 = vld [vmem:[%s2 + $0x18] sm:$0xf]
  %v30 = vld [vmem:[%s2 + $0x1c] sm:$0xf]
  %v31 = vld [vmem:[%s2 + $0x20] sm:$0xf]
  %v32 = vld [vmem:[%s2 + $0x24] sm:$0xf]
  %v33 = vld [vmem:[%s2 + $0x28] sm:$0xf]
  %v34 = vld [vmem:[%s2 + $0x2c] sm:$0xf]
  %v35 = vld [vmem:[%s2 + $0x30] sm:$0xf]
  %v36 = vld [vmem:[%s2 + $0x34] sm:$0xf]
  %v37 = vld [vmem:[%s2 + $0x38] sm:$0xf]
  %v38 = vld [vmem:[%s2 + $0x3c] sm:$0xf]
  %v39 = vld [vmem:[%s2 + $0x40] sm:$0xf]
  %v40 = vld [vmem:[%s2 + $0x44] sm:$0xf]
  %v41 = vld [vmem:[%s2 + $0x48] sm:$0xf]
  %v42 = vld [vmem:[%s2 + $0x4c] sm:$0xf]
  %v43 = vld [vmem:[%s2 + $0x50] sm:$0xf]
  %v44 = vld [vmem:[%s2 + $0x54] sm:$0xf]
  %v45 = vld [vmem:[%s2 + $0x58] sm:$0xf]
  %v46 = vld [vmem:[%s2 + $0x5c] sm:$0xf]
  %v47 = vld [vmem:[%s2 + $0x60] sm:$0xf]
  %v48 = vld [vmem:[%s2 + $0x64] sm:$0xf]
  %v49 = vld [vmem:[%s2 + $0x68] sm:$0xf]
  %v50 = vld [vmem:[%s2 + $0x6c] sm:$0xf]
  %v51 = vld [vmem:[%s2 + $0x70] sm:$0xf]
  %v52 = vld [vmem:[%s2 + $0x74] sm:$0xf]
  %v53 = vld [vmem:[%s2 + $0x78] sm:$0xf]
  %v54 = vld [vmem:[%s2 + $0x7c] sm:$0xf]
  %v55 = vld [vmem:[%s2 + $0x80] sm:$0xf]
  %v56 = vld [vmem:[%s2 + $0x84] sm:$0xf]
  %v57 = vld [vmem:[%s2 + $0x88] sm:$0xf]
  %v58 = vld [vmem:[%s2 + $0x8c] sm:$0xf]
  %v59 = vld [vmem:[%s1] sm:$0xff]
  %v60 = vld [vmem:[%s1 + $0x8] sm:$0xff]
  %v61 = vld [vmem:[%s1 + $0x10] sm:$0xff]
  %v62 = vld [vmem:[%s1 + $0x18] sm:$0xff]
  %64 = vset.pattern.permute.xlu0 0
  %65 = vperm.xlu0 %64, %v59
  %v66 = vpop.permute.xlu0 %65
  %69 = vset.pattern.permute.xlu0 0
  %70 = vperm.xlu0 %69, %v60
  %v71 = vpop.permute.xlu0 %70
  %74 = vset.pattern.permute.xlu0 0
  %75 = vperm.xlu0 %74, %v61
  %v76 = vpop.permute.xlu0 %75
  %79 = vset.pattern.permute.xlu0 0
  %80 = vperm.xlu0 %79, %v62
  %v81 = vpop.permute.xlu0 %80
  %v91 = vunpack.c.l.b16 %v15
  %v92 = vunpack.c.h.b16 %v15
  %v93 = vunpack.c.l.b16 %v16
  %v94 = vunpack.c.l.b16 %v17
  %v95 = vunpack.c.h.b16 %v17
  %v96 = vunpack.c.l.b16 %v18
  %v97 = vunpack.c.l.b16 %v19
  %v98 = vunpack.c.h.b16 %v19
  %v99 = vunpack.c.l.b16 %v20
  %v100 = vunpack.c.l.b16 %v21
  %v101 = vunpack.c.h.b16 %v21
  %v102 = vunpack.c.l.b16 %v22
  %v103 = vpack.c.b16 %v94, %v91
  %v104 = vpack.c.b16 %v95, %v92
  %v105 = vpack.c.b16 %v96, %v93
  %v106 = vpack.c.b16 %v100, %v97
  %v107 = vpack.c.b16 %v101, %v98
  %v108 = vpack.c.b16 %v102, %v99
  %v149 = vunpack.c.l.b16 %v23
  %v150 = vunpack.c.l.b16 %v24
  %v151 = vunpack.c.l.b16 %v25
  %v152 = vunpack.c.l.b16 %v26
  %v153 = vunpack.c.l.b16 %v27
  %v154 = vunpack.c.l.b16 %v28
  %v155 = vunpack.c.l.b16 %v29
  %v156 = vunpack.c.l.b16 %v30
  %v157 = vunpack.c.l.b16 %v31
  %v158 = vunpack.c.l.b16 %v32
  %v159 = vunpack.c.l.b16 %v33
  %v160 = vunpack.c.l.b16 %v34
  %v161 = vunpack.c.l.b16 %v35
  %v162 = vunpack.c.l.b16 %v36
  %v163 = vunpack.c.l.b16 %v37
  %v164 = vunpack.c.l.b16 %v38
  %v165 = vunpack.c.l.b16 %v39
  %v166 = vunpack.c.l.b16 %v40
  %v167 = vunpack.c.l.b16 %v41
  %v168 = vunpack.c.l.b16 %v42
  %v169 = vunpack.c.l.b16 %v43
  %v170 = vunpack.c.l.b16 %v44
  %v171 = vunpack.c.l.b16 %v45
  %v172 = vunpack.c.l.b16 %v46
  %v173 = vunpack.c.l.b16 %v47
  %v174 = vunpack.c.l.b16 %v48
  %v175 = vunpack.c.l.b16 %v49
  %v176 = vunpack.c.l.b16 %v50
  %v177 = vunpack.c.l.b16 %v51
  %v178 = vunpack.c.l.b16 %v52
  %v179 = vunpack.c.l.b16 %v53
  %v180 = vunpack.c.l.b16 %v54
  %v181 = vunpack.c.l.b16 %v55
  %v182 = vunpack.c.l.b16 %v56
  %v183 = vunpack.c.l.b16 %v57
  %v184 = vunpack.c.l.b16 %v58
  %v185 = vpack.c.b16 %v150, %v149
  %v186 = vpack.c.b16 %v152, %v151
  %v187 = vpack.c.b16 %v154, %v153
  %v188 = vpack.c.b16 %v156, %v155
  %v189 = vpack.c.b16 %v158, %v157
  %v190 = vpack.c.b16 %v160, %v159
  %v191 = vpack.c.b16 %v162, %v161
  %v192 = vpack.c.b16 %v164, %v163
  %v193 = vpack.c.b16 %v166, %v165
  %v194 = vpack.c.b16 %v168, %v167
  %v195 = vpack.c.b16 %v170, %v169
  %v196 = vpack.c.b16 %v172, %v171
  %v197 = vpack.c.b16 %v174, %v173
  %v198 = vpack.c.b16 %v176, %v175
  %v199 = vpack.c.b16 %v178, %v177
  %v200 = vpack.c.b16 %v180, %v179
  %v201 = vpack.c.b16 %v182, %v181
  %v202 = vpack.c.b16 %v184, %v183
  %vm221 = vcmask 261120
  %v223 = vsel %vm221, %v105, 0
  %v226 = vsel %vm221, %v108, 0
  %228 = vmatprep.subr.bf16.mxu0 0
  %229 = vmatpush1.bf16.msra.mxu0 %v192
  %230 = vmatprep.subr.bf16.mxu0 0
  %231 = vmatpush1.bf16.msra.mxu0 %v191
  %232 = vmatprep.subr.bf16.mxu0 0
  %233 = vmatpush1.bf16.msra.mxu0 %v190
  %234 = vmatprep.subr.bf16.mxu0 0
  %235 = vmatpush1.bf16.msra.mxu0 %v189
  %236 = vmatprep.subr.bf16.mxu0 0
  %237 = vmatpush1.bf16.msra.mxu0 %v188
  %238 = vmatprep.subr.bf16.mxu0 0
  %239 = vmatpush1.bf16.msra.mxu0 %v187
  %240 = vmatprep.subr.bf16.mxu0 0
  %241 = vmatpush1.bf16.msra.mxu0 %v186
  %242 = vmatprep.subr.bf16.mxu0 0
  %243 = vmatpush1.bf16.msra.mxu0 %v185
  %244 = vmatprep.subr.bf16.mxu0 0
  %245 = vmatpush2.bf16.msra.mxu0 %v200
  %246 = vmatprep.subr.bf16.mxu0 0
  %247 = vmatpush2.bf16.msra.mxu0 %v199
  %248 = vmatprep.subr.bf16.mxu0 0
  %249 = vmatpush2.bf16.msra.mxu0 %v198
  %250 = vmatprep.subr.bf16.mxu0 0
  %251 = vmatpush2.bf16.msra.mxu0 %v197
  %252 = vmatprep.subr.bf16.mxu0 0
  %253 = vmatpush2.bf16.msra.mxu0 %v196
  %254 = vmatprep.subr.bf16.mxu0 0
  %255 = vmatpush2.bf16.msra.mxu0 %v195
  %256 = vmatprep.subr.bf16.mxu0 0
  %257 = vmatpush2.bf16.msra.mxu0 %v194
  %258 = vmatprep.subr.bf16.mxu0 0
  %259 = vmatpush2.bf16.msra.mxu0 %v193
  %260 = vmatprep.mubr.bf16.mxu0 %v104
  %261 = vmatmul.mubr.bf16.gmra.mxu0 %v103
  %v262 = vpop.f32.mrf.mxu0
  %v263 = vadd.f32 %v66, %v262
  %v264 = vpop.f32.mrf.mxu0
  %v265 = vpop.f32.mrf.mxu0
  %v266 = vadd.f32 %v71, %v265
  %v267 = vpop.f32.mrf.mxu0
  %268 = vmatprep.mubr.bf16.mxu0 %v107
  %269 = vmatmul.mubr.bf16.gmra.mxu0 %v106
  %v270 = vpop.f32.mrf.mxu0
  %v271 = vadd.f32 %v76, %v270
  %v272 = vpop.f32.mrf.mxu0
  %v273 = vpop.f32.mrf.mxu0
  %v274 = vadd.f32 %v81, %v273
  %v275 = vpop.f32.mrf.mxu0
  %276 = vdwg.mxu0
  %277 = vmatprep.subr.bf16.mxu0 0
  %278 = vmatpush1.bf16.msra.mxu0 0
  %279 = vmatprep.subr.bf16.mxu0 0
  %280 = vmatpush1.bf16.msra.mxu0 0
  %281 = vmatprep.subr.bf16.mxu0 0
  %282 = vmatpush1.bf16.msra.mxu0 0
  %283 = vmatprep.subr.bf16.mxu0 0
  %284 = vmatpush1.bf16.msra.mxu0 0
  %285 = vmatprep.subr.bf16.mxu0 0
  %286 = vmatpush1.bf16.msra.mxu0 0
  %287 = vmatprep.subr.bf16.mxu0 0
  %288 = vmatpush1.bf16.msra.mxu0 0
  %289 = vmatprep.subr.bf16.mxu0 0
  %290 = vmatpush1.bf16.msra.mxu0 %v202
  %291 = vmatprep.subr.bf16.mxu0 0
  %292 = vmatpush1.bf16.msra.mxu0 %v201
  %293 = vmatprep.subr.bf16.mxu0 0
  %294 = vmatpush2.bf16.msra.mxu0 0
  %295 = vmatprep.subr.bf16.mxu0 0
  %296 = vmatpush2.bf16.msra.mxu0 0
  %297 = vmatprep.subr.bf16.mxu0 0
  %298 = vmatpush2.bf16.msra.mxu0 0
  %299 = vmatprep.subr.bf16.mxu0 0
  %300 = vmatpush2.bf16.msra.mxu0 0
  %301 = vmatprep.subr.bf16.mxu0 0
  %302 = vmatpush2.bf16.msra.mxu0 0
  %303 = vmatprep.subr.bf16.mxu0 0
  %304 = vmatpush2.bf16.msra.mxu0 0
  %305 = vmatprep.subr.bf16.mxu0 0
  %306 = vmatpush2.bf16.msra.mxu0 0
  %307 = vmatprep.subr.bf16.mxu0 0
  %308 = vmatpush2.bf16.msra.mxu0 0
  %309 = vmatprep.mubr.bf16.mxu0 0
  %310 = vmatmul.mubr.bf16.gmra.mxu0 %v223
  %v311 = vpop.f32.mrf.mxu0
  %v312 = vadd.f32 %v263, %v311
  %v313 = vpop.f32.mrf.mxu0
  %v314 = vpop.f32.mrf.mxu0
  %v315 = vadd.f32 %v266, %v314
  %v316 = vpop.f32.mrf.mxu0
  %317 = vmatprep.mubr.bf16.mxu0 0
  %318 = vmatmul.mubr.bf16.gmra.mxu0 %v226
  %v319 = vpop.f32.mrf.mxu0
  %v320 = vadd.f32 %v271, %v319
  %v321 = vpop.f32.mrf.mxu0
  %v322 = vpop.f32.mrf.mxu0
  %v323 = vadd.f32 %v274, %v322
  %v324 = vpop.f32.mrf.mxu0
  %325 = vdwg.mxu0
  %326 = vst [vmem:[%s3] sm:$0xff] %v312
  %327 = vst [vmem:[%s3 + $0x8] sm:$0xff] %v315
  %328 = vst [vmem:[%s3 + $0x10] sm:$0xff] %v320
  %329 = vst [vmem:[%s3 + $0x18] sm:$0xff] %v323
  // Predicated region
  $region14: #{featurenet_forward.29} parent=0 // pred_check
    _
  $region15: #{featurenet_forward.29} parent=0 // pred_check_branch
    %331 = sbr.rel (0) target = $region17
  $region16: #{featurenet_forward.29} parent=0 // pred_region
    _
  $region17: #{featurenet_forward.29} parent=0 // pred_fallthru
    _
  // Predicated region
  $region18: #{featurenet_forward.29} parent=0 // pred_check
    _
  $region19: #{featurenet_forward.29} parent=0 // pred_check_branch
    %333 = sbr.rel (0) target = $region21
  $region20: #{featurenet_forward.29} parent=0 // pred_region
    _
  $region21: #{featurenet_forward.29} parent=0 // pred_fallthru
    _

</llo_original>
